<compile_context>
chip_gen: v6e
topology: v6e:2x2x1
jax: 0.10.0
libtpu: 0.0.40
codegen_flags: <defaults>
</compile_context>

<pallas_src>
import functools
import math

import jax
import jax.numpy as jnp
from jax.experimental import pallas as pl
from jax.experimental.pallas import tpu as pltpu


# ----------------------------------------------------------------------------
# Fused transformer-encoder kernel (one batch block x one layer per grid step)
# ----------------------------------------------------------------------------

def _layer_norm(y, w, b, eps=1e-5):
    mu = jnp.mean(y, axis=-1, keepdims=True)
    var = jnp.mean((y - mu) ** 2, axis=-1, keepdims=True)
    return (y - mu) * jax.lax.rsqrt(var + eps) * w + b


def _fused_encoder_kernel(
    # inputs (per-grid-step blocks)
    x_ref,                              # (S, D) projected input (+pos) for this batch block
    wqkv_ref, wo_ref, w1_ref, w2_ref,   # per-layer weight matrices
    vec_ref,                            # (8, W_pad) packed per-layer vectors
    w_out_ref, b_out_ref,               # output head (lane-padded)
    # output
    out_ref,                            # (S, d_out_pad)
    # scratch
    x_res_ref, attn_ref,                # (S, D) VMEM each
    *, nhead, d_hid, mxu_dtype,
):
    l = pl.program_id(1)                # layer index (inner, "arbitrary") axis
    S, D = x_res_ref.shape
    d_head = D // nhead
    scale = 1.0 / math.sqrt(d_head)

    def mm(a, b):                       # MXU matmul with f32 accumulation
        return jnp.dot(a.astype(mxu_dtype), b.astype(mxu_dtype),
                       preferred_element_type=jnp.float32)

    # ---- layer 0: load this batch block's residual stream into VMEM --------
    @pl.when(l == 0)
    def _():
        x_res_ref[...] = x_ref[...]

    xf = x_res_ref[...]                                       # (S, D)

    # ---- unpack the single per-layer vector block (static sublane rows) ----
    vec = vec_ref[...]                                        # (8, W_pad)
    bqkv = vec[0:1, :3 * D]
    bo   = vec[1:2, :D]
    ln1w = vec[2:3, :D]
    ln1b = vec[3:4, :D]
    b1   = vec[4:5, :d_hid]
    b2   = vec[5:6, :D]
    ln2w = vec[6:7, :D]
    ln2b = vec[7:8, :D]

    # ---- multi-head self-attention ------------------------------------------
    qkv = mm(xf, wqkv_ref[...]) + bqkv                        # (S, 3D)
    q = qkv[:, 0:D]
    k = qkv[:, D:2 * D]
    v = qkv[:, 2 * D:3 * D]

    # Batch is handled by the grid; only a short static head loop remains and
    # each head's context is stored directly into VMEM scratch (no concats).
    for h in range(nhead):
        c0 = h * d_head
        qh = q[:, c0:c0 + d_head]
        kh = k[:, c0:c0 + d_head]
        vh = v[:, c0:c0 + d_head]
        s = jax.lax.dot_general(                               # q @ k^T
            qh.astype(mxu_dtype), kh.astype(mxu_dtype),
            (((1,), (1,)), ((), ())),
            preferred_element_type=jnp.float32) * scale
        s = s - jnp.max(s, axis=-1, keepdims=True)
        p = jnp.exp(s)
        denom = jnp.sum(p, axis=-1, keepdims=True)
        r = pl.reciprocal(denom, approx=True)                  # EUP
        r = r * (2.0 - denom * r)                              # one Newton step
        p = p * r
        attn_ref[:, c0:c0 + d_head] = mm(p, vh)

    # Output projection + residual + LayerNorm 1.
    attn = mm(attn_ref[...], wo_ref[...]) + bo
    y = _layer_norm(xf + attn, ln1w, ln1b)

    # ---- feed-forward --------------------------------------------------------
    f = mm(y, w1_ref[...]) + b1
    f = jnp.maximum(f, 0.0)                                   # ReLU
    f = mm(f, w2_ref[...]) + b2
    z = _layer_norm(y + f, ln2w, ln2b)

    x_res_ref[...] = z                                        # residual stays in VMEM

    # ---- last layer: output head (lane-dense, padded to 128) ----------------
    @pl.when(l == pl.num_programs(1) - 1)
    def _():
        out_ref[...] = mm(z, w_out_ref[...]) + b_out_ref[...]


# ----------------------------------------------------------------------------
# Parameter construction (deterministic, xavier_uniform like _reset_parameters)
# ----------------------------------------------------------------------------

def _xavier(key, shape):
    fan_out, fan_in = shape
    limit = math.sqrt(6.0 / (fan_in + fan_out))
    return jax.random.uniform(key, shape, jnp.float32, -limit, limit)


def _bias(key, fan_in, n):
    bound = 1.0 / math.sqrt(fan_in)
    return jax.random.uniform(key, (n,), jnp.float32, -bound, bound)


def _positional_encoding(emb_size, maxlen):
    den = jnp.exp(-jnp.arange(0, emb_size, 2, dtype=jnp.float32)
                  * math.log(10000.0) / emb_size)
    pos = jnp.arange(0, maxlen, dtype=jnp.float32)[:, None]
    ang = pos * den[None, :]
    pe = jnp.zeros((maxlen, emb_size), jnp.float32)
    pe = pe.at[:, 0::2].set(jnp.sin(ang))
    pe = pe.at[:, 1::2].set(jnp.cos(ang))
    return pe                                                 # (maxlen, emb_size)


def make_params(key, d_in, d_out, d_model, d_hid, nlayers, seq_len):
    """Weights pre-transposed as (in_features, out_features); biases 1-D."""
    params = {}
    keys = jax.random.split(key, 4 + 8 * nlayers)
    ki = iter(keys)

    if d_in != d_model:
        params["w_in"] = _xavier(next(ki), (d_model, d_in)).T     # (d_in, D)
        params["b_in"] = _bias(next(ki), d_in, d_model)

    params["pos"] = _positional_encoding(d_model, seq_len)

    layers = []
    for _ in range(nlayers):
        layers.append(dict(
            wqkv=_xavier(next(ki), (3 * d_model, d_model)).T,     # (D, 3D)
            bqkv=_bias(next(ki), d_model, 3 * d_model),
            wo=_xavier(next(ki), (d_model, d_model)).T,           # (D, D)
            bo=_bias(next(ki), d_model, d_model),
            ln1w=jnp.ones((d_model,), jnp.float32),
            ln1b=jnp.zeros((d_model,), jnp.float32),
            w1=_xavier(next(ki), (d_hid, d_model)).T,             # (D, H)
            b1=_bias(next(ki), d_model, d_hid),
            w2=_xavier(next(ki), (d_model, d_hid)).T,             # (H, D)
            b2=_bias(next(ki), d_hid, d_model),
            ln2w=jnp.ones((d_model,), jnp.float32),
            ln2b=jnp.zeros((d_model,), jnp.float32),
        ))
    params["layers"] = layers

    params["w_out"] = _xavier(next(ki), (d_out, d_model)).T       # (D, d_out)
    params["b_out"] = _bias(next(ki), d_model, d_out)
    return params


# ----------------------------------------------------------------------------
# Wrapper: full Transformer forward in a single pallas_call, grid=(N, nlayers)
# ----------------------------------------------------------------------------

def transformer_forward(codes, params, nhead, *, mxu_dtype=jnp.float32):
    S, N, d_in = codes.shape
    d_model = params["pos"].shape[-1]
    layers = params["layers"]
    L = len(layers)
    d_hid = layers[0]["w1"].shape[-1]
    d_out = params["w_out"].shape[-1]

    assert d_model % nhead == 0, "d_model must be divisible by nhead"
    assert S <= params["pos"].shape[0], "sequence longer than positional table"
    assert S % 8 == 0, "per-batch token block must be a multiple of 8 sublanes"
    # TODO(synk): pad S to a multiple of 8 for out-of-contract sequence lengths.

    d_out_pad = ((d_out + 127) // 128) * 128

    # ---- one-off input projection + positional add in plain XLA -------------
    x = codes.astype(jnp.float32)
    if "w_in" in params:
        x = x @ params["w_in"] + params["b_in"]
    x = x + params["pos"][:S][:, None, :]                      # (S, N, D)
    x_flat = jnp.transpose(x, (1, 0, 2)).reshape(N * S, d_model)  # batch-major rows

    # ---- stack per-layer weight matrices along a leading layer axis ---------
    def stk(name, dtype):
        return jnp.stack([lyr[name] for lyr in layers]).astype(dtype)

    wqkv = stk("wqkv", mxu_dtype)
    wo = stk("wo", mxu_dtype)
    w1 = stk("w1", mxu_dtype)
    w2 = stk("w2", mxu_dtype)

    # ---- pack the 8 small per-layer vectors into ONE (L, 8, W_pad) block ----
    W_pad = ((max(3 * d_model, d_hid) + 127) // 128) * 128

    def pad_row(v):
        return jnp.zeros((W_pad,), jnp.float32).at[:v.shape[0]].set(v)

    vec_names = ("bqkv", "bo", "ln1w", "ln1b", "b1", "b2", "ln2w", "ln2b")
    vecs = jnp.stack([jnp.stack([pad_row(lyr[n]) for n in vec_names])
                      for lyr in layers])                       # (L, 8, W_pad)

    # ---- lane-pad the output head (unmasked stores) --------------------------
    w_out_p = (jnp.zeros((d_model, d_out_pad), jnp.float32)
               .at[:, :d_out].set(params["w_out"])).astype(mxu_dtype)
    b_out_p = jnp.zeros((1, d_out_pad), jnp.float32).at[:, :d_out].set(params["b_out"])

    def inv(shape):        # grid-invariant full-array block
        return pl.BlockSpec(shape, lambda b, l, _nd=len(shape): (0,) * _nd)

    def per_layer(shape):  # (L, *shape) stacked; select layer l, squeeze layer dim
        return pl.BlockSpec((None,) + shape,
                            lambda b, l, _nd=len(shape): (l,) + (0,) * _nd)

    # ---- VMEM budget: resident + double-buffered blocks + scratch ------------
    wbytes = jnp.dtype(mxu_dtype).itemsize
    vmem_bytes = (
        2 * wbytes * (d_model * 3 * d_model + d_model * d_model + 2 * d_model * d_hid)
        + 2 * 4 * 8 * W_pad                              # packed vectors
        + 2 * 4 * S * d_model                            # x block
        + 2 * 4 * S * d_out_pad                          # out block
        + 2 * (wbytes * d_model * d_out_pad + 4 * d_out_pad)   # head
        + 2 * 4 * S * d_model                            # scratch (x_res + attn)
    )
    vmem_limit = int(min(64 * 1024 * 1024, max(16 * 1024 * 1024,
                                               2 * vmem_bytes + (2 << 20))))

    kernel = functools.partial(_fused_encoder_kernel,
                               nhead=nhead, d_hid=d_hid, mxu_dtype=mxu_dtype)

    out = pl.pallas_call(
        kernel,
        out_shape=jax.ShapeDtypeStruct((N * S, d_out_pad), jnp.float32),
        grid_spec=pltpu.PrefetchScalarGridSpec(
            num_scalar_prefetch=0,
            grid=(N, L),                                   # batch outer, layer inner
            in_specs=[
                pl.BlockSpec((S, d_model), lambda b, l: (b, 0)),   # x (per batch)
                per_layer((d_model, 3 * d_model)),                 # wqkv
                per_layer((d_model, d_model)),                     # wo
                per_layer((d_model, d_hid)),                       # w1
                per_layer((d_hid, d_model)),                       # w2
                per_layer((8, W_pad)),                             # packed vectors
                inv((d_model, d_out_pad)),                         # w_out (padded)
                inv((1, d_out_pad)),                               # b_out (padded)
            ],
            out_specs=pl.BlockSpec((S, d_out_pad), lambda b, l: (b, 0)),
            scratch_shapes=[pltpu.VMEM((S, d_model), jnp.float32),   # residual stream
                            pltpu.VMEM((S, d_model), jnp.float32)],  # attn context
        ),
        compiler_params=pltpu.CompilerParams(
            dimension_semantics=("parallel", "arbitrary"),
            vmem_limit_bytes=vmem_limit),
    )(x_flat, wqkv, wo, w1, w2, vecs, w_out_p, b_out_p)

    out = out[:, :d_out].reshape(N, S, d_out).transpose(1, 0, 2)   # (S, N, d_out)
    return out


# ----------------------------------------------------------------------------
# Pure-JAX reference (for correctness check against the Pallas kernel)
# ----------------------------------------------------------------------------

def _ln_ref(y, w, b, eps=1e-5):
    mu = jnp.mean(y, axis=-1, keepdims=True)
    var = jnp.mean((y - mu) ** 2, axis=-1, keepdims=True)
    return (y - mu) / jnp.sqrt(var + eps) * w + b


def reference_forward(codes, params, nhead):
    S, N, _ = codes.shape
    D = params["pos"].shape[-1]
    d_head = D // nhead

    x = codes
    if "w_in" in params:
        x = x @ params["w_in"] + params["b_in"]
    x = x + params["pos"][:S][:, None, :]

    for layer in params["layers"]:
        qkv = x @ layer["wqkv"] + layer["bqkv"]                    # (S,N,3D)
        q, k, v = qkv[..., :D], qkv[..., D:2 * D], qkv[..., 2 * D:]
        qh = q.reshape(S, N, nhead, d_head)
        kh = k.reshape(S, N, nhead, d_head)
        vh = v.reshape(S, N, nhead, d_head)
        scores = jnp.einsum("snhd,tnhd->nhst", qh, kh) / math.sqrt(d_head)
        p = jax.nn.softmax(scores, axis=-1)
        o = jnp.einsum("nhst,tnhd->snhd", p, vh).reshape(S, N, D)
        o = o @ layer["wo"] + layer["bo"]
        y = _ln_ref(x + o, layer["ln1w"], layer["ln1b"])
        f = jax.nn.relu(y @ layer["w1"] + layer["b1"])
        f = f @ layer["w2"] + layer["b2"]
        x = _ln_ref(y + f, layer["ln2w"], layer["ln2b"])

    return x @ params["w_out"] + params["b_out"]


# ----------------------------------------------------------------------------
# Main
# ----------------------------------------------------------------------------

if __name__ == "__main__":
    # Small config consistent with Transformer(d_in, d_out, d_model, nhead,
    # d_hid, nlayers, dropout=0.0, seq_len=64, batch_first=False).
    S, N = 8, 2            # seq, batch
    d_in, d_out = 4, 6
    d_model, nhead = 32, 4
    d_hid, nlayers = 64, 2
    seq_len = 64

    key = jax.random.PRNGKey(0)
    k_codes, k_params = jax.random.split(key)

    codes = jax.random.normal(k_codes, (S, N, d_in), jnp.float32)
    params = make_params(k_params, d_in, d_out, d_model, d_hid, nlayers, seq_len)

    out = jax.block_until_ready(transformer_forward(codes, params, nhead))
    ref = jax.block_until_ready(reference_forward(codes, params, nhead))

    assert out.shape == (S, N, d_out), out.shape
    max_err = float(jnp.max(jnp.abs(out - ref)))
    assert max_err < 5e-4, f"mismatch vs reference: {max_err}"

    print("KERNEL_OK")
</pallas_src>

<mosaic_0001>
module attributes {stable_mosaic.version = 11 : i64} {
  func.func @_fused_encoder_kernel(%arg0: i32, %arg1: i32, %arg2: memref<8x32xf32, #tpu.memory_space<vmem>>, %arg3: memref<1x32x96xf32, #tpu.memory_space<vmem>>, %arg4: memref<1x32x32xf32, #tpu.memory_space<vmem>>, %arg5: memref<1x32x64xf32, #tpu.memory_space<vmem>>, %arg6: memref<1x64x32xf32, #tpu.memory_space<vmem>>, %arg7: memref<1x8x128xf32, #tpu.memory_space<vmem>>, %arg8: memref<32x128xf32, #tpu.memory_space<vmem>>, %arg9: memref<1x128xf32, #tpu.memory_space<vmem>>, %arg10: memref<8x128xf32, #tpu.memory_space<vmem>>, %arg11: memref<8x32xf32, #tpu.memory_space<vmem>>, %arg12: memref<8x32xf32, #tpu.memory_space<vmem>>) attributes {dimension_semantics = [#tpu.dimension_semantics<parallel>, #tpu.dimension_semantics<arbitrary>], iteration_bounds = array<i64: 2, 2>, scalar_prefetch = 0 : i64, scratch_operands = 2 : i64, tpu.core_type = #tpu.core_type<tc>, window_params = [{transform_indices = @transform_0, window_bounds = array<i64: 8, 32>}, {transform_indices = @transform_1, window_bounds = array<i64: 1, 32, 96>}, {transform_indices = @transform_2, window_bounds = array<i64: 1, 32, 32>}, {transform_indices = @transform_3, window_bounds = array<i64: 1, 32, 64>}, {transform_indices = @transform_4, window_bounds = array<i64: 1, 64, 32>}, {transform_indices = @transform_5, window_bounds = array<i64: 1, 8, 128>}, {pipeline_mode = #tpu.pipeline_mode<synchronous>, transform_indices = @transform_6, window_bounds = array<i64: 32, 128>}, {pipeline_mode = #tpu.pipeline_mode<synchronous>, transform_indices = @transform_7, window_bounds = array<i64: 1, 128>}, {transform_indices = @transform_8, window_bounds = array<i64: 8, 128>}]} {
    %c0_i32 = arith.constant 0 : i32
    %0 = arith.cmpi eq, %arg1, %c0_i32 : i32
    %1 = arith.extui %0 : i1 to i32
    %c0_i32_0 = arith.constant 0 : i32
    %2 = arith.cmpi ne, %1, %c0_i32_0 : i32
    scf.if %2 {
      %c0_65 = arith.constant 0 : index
      %c0_66 = arith.constant 0 : index
      %178 = vector.load %arg2[%c0_65, %c0_66] : memref<8x32xf32, #tpu.memory_space<vmem>>, vector<8x32xf32>
      %c0_67 = arith.constant 0 : index
      %c0_68 = arith.constant 0 : index
      %179 = vector.load %arg11[%c0_67, %c0_68] : memref<8x32xf32, #tpu.memory_space<vmem>>, vector<8x32xf32>
      tpu.vector_store %arg11[%c0_67, %c0_68], %178 {strides = array<i32>} : memref<8x32xf32, #tpu.memory_space<vmem>>, vector<8x32xf32>,
    } else {
    }
    %c0 = arith.constant 0 : index
    %c0_1 = arith.constant 0 : index
    %3 = vector.load %arg11[%c0, %c0_1] : memref<8x32xf32, #tpu.memory_space<vmem>>, vector<8x32xf32>
    %c0_2 = arith.constant 0 : index
    %c0_3 = arith.constant 0 : index
    %c0_4 = arith.constant 0 : index
    %4 = vector.load %arg7[%c0_2, %c0_3, %c0_4] : memref<1x8x128xf32, #tpu.memory_space<vmem>>, vector<1x8x128xf32>
    %5 = vector.shape_cast %4 : vector<1x8x128xf32> to vector<8x128xf32>
    %6 = vector.extract_strided_slice %5 {offsets = [0, 0], sizes = [1, 96], strides = [1, 1]} : vector<8x128xf32> to vector<1x96xf32>
    %7 = vector.extract_strided_slice %5 {offsets = [1, 0], sizes = [1, 32], strides = [1, 1]} : vector<8x128xf32> to vector<1x32xf32>
    %8 = vector.extract_strided_slice %5 {offsets = [2, 0], sizes = [1, 32], strides = [1, 1]} : vector<8x128xf32> to vector<1x32xf32>
    %9 = vector.extract_strided_slice %5 {offsets = [3, 0], sizes = [1, 32], strides = [1, 1]} : vector<8x128xf32> to vector<1x32xf32>
    %10 = vector.extract_strided_slice %5 {offsets = [4, 0], sizes = [1, 64], strides = [1, 1]} : vector<8x128xf32> to vector<1x64xf32>
    %11 = vector.extract_strided_slice %5 {offsets = [5, 0], sizes = [1, 32], strides = [1, 1]} : vector<8x128xf32> to vector<1x32xf32>
    %12 = vector.extract_strided_slice %5 {offsets = [6, 0], sizes = [1, 32], strides = [1, 1]} : vector<8x128xf32> to vector<1x32xf32>
    %13 = vector.extract_strided_slice %5 {offsets = [7, 0], sizes = [1, 32], strides = [1, 1]} : vector<8x128xf32> to vector<1x32xf32>
    %c0_5 = arith.constant 0 : index
    %c0_6 = arith.constant 0 : index
    %c0_7 = arith.constant 0 : index
    %14 = vector.load %arg3[%c0_5, %c0_6, %c0_7] : memref<1x32x96xf32, #tpu.memory_space<vmem>>, vector<1x32x96xf32>
    %15 = vector.shape_cast %14 : vector<1x32x96xf32> to vector<32x96xf32>
    %cst = arith.constant dense<0.000000e+00> : vector<8x96xf32>
    %16 = tpu.matmul %3, %15, %cst {dimension_numbers = #tpu.dot_dimension_numbers<[1], [0], [0], [1], [0, 0, 1, 1], [], []>} : vector<8x32xf32>, vector<32x96xf32>, vector<8x96xf32> -> vector<8x96xf32>
    %17 = vector.broadcast %6 : vector<1x96xf32> to vector<8x96xf32>
    %18 = arith.addf %16, %17 : vector<8x96xf32>
    %19 = vector.extract_strided_slice %18 {offsets = [0, 0], sizes = [8, 32], strides = [1, 1]} : vector<8x96xf32> to vector<8x32xf32>
    %20 = vector.extract_strided_slice %18 {offsets = [0, 32], sizes = [8, 32], strides = [1, 1]} : vector<8x96xf32> to vector<8x32xf32>
    %21 = vector.extract_strided_slice %18 {offsets = [0, 64], sizes = [8, 32], strides = [1, 1]} : vector<8x96xf32> to vector<8x32xf32>
    %22 = vector.extract_strided_slice %19 {offsets = [0, 0], sizes = [8, 8], strides = [1, 1]} : vector<8x32xf32> to vector<8x8xf32>
    %23 = vector.extract_strided_slice %20 {offsets = [0, 0], sizes = [8, 8], strides = [1, 1]} : vector<8x32xf32> to vector<8x8xf32>
    %24 = vector.extract_strided_slice %21 {offsets = [0, 0], sizes = [8, 8], strides = [1, 1]} : vector<8x32xf32> to vector<8x8xf32>
    %cst_8 = arith.constant dense<0.000000e+00> : vector<8x8xf32>
    %25 = tpu.matmul %22, %23, %cst_8 {dimension_numbers = #tpu.dot_dimension_numbers<[1], [1], [0], [0], [0, 0, 1, 0], [], []>} : vector<8x8xf32>, vector<8x8xf32>, vector<8x8xf32> -> vector<8x8xf32>
    %cst_9 = arith.constant 0.353553385 : f32
    %26 = vector.broadcast %cst_9 : f32 to vector<8x8xf32>
    %27 = arith.mulf %25, %26 : vector<8x8xf32>
    %cst_10 = arith.constant dense<0xFF800000> : vector<8xf32>
    %28 = vector.multi_reduction <maximumf>, %27, %cst_10 [1] : vector<8x8xf32> to vector<8xf32>
    %29 = vector.shape_cast %28 : vector<8xf32> to vector<8x1xf32>
    %30 = vector.broadcast %29 : vector<8x1xf32> to vector<8x8xf32>
    %31 = arith.subf %27, %30 : vector<8x8xf32>
    %32 = math.exp %31 : vector<8x8xf32>
    %cst_11 = arith.constant dense<0.000000e+00> : vector<8xf32>
    %33 = vector.multi_reduction <add>, %32, %cst_11 [1] : vector<8x8xf32> to vector<8xf32>
    %34 = vector.shape_cast %33 : vector<8xf32> to vector<8x1xf32>
    %35 = tpu.reciprocal %34 {approx = true} : vector<8x1xf32> -> vector<8x1xf32>
    %36 = arith.mulf %34, %35 : vector<8x1xf32>
    %cst_12 = arith.constant 2.000000e+00 : f32
    %37 = vector.broadcast %cst_12 : f32 to vector<8x1xf32>
    %38 = arith.subf %37, %36 : vector<8x1xf32>
    %39 = arith.mulf %35, %38 : vector<8x1xf32>
    %40 = vector.broadcast %39 : vector<8x1xf32> to vector<8x8xf32>
    %41 = arith.mulf %32, %40 : vector<8x8xf32>
    %cst_13 = arith.constant dense<0.000000e+00> : vector<8x8xf32>
    %42 = tpu.matmul %41, %24, %cst_13 {dimension_numbers = #tpu.dot_dimension_numbers<[1], [0], [0], [1], [0, 0, 1, 1], [], []>} : vector<8x8xf32>, vector<8x8xf32>, vector<8x8xf32> -> vector<8x8xf32>
    %c0_14 = arith.constant 0 : index
    %c0_15 = arith.constant 0 : index
    %43 = vector.load %arg12[%c0_14, %c0_15] : memref<8x32xf32, #tpu.memory_space<vmem>>, vector<8x8xf32>
    tpu.vector_store %arg12[%c0_14, %c0_15], %42 {strides = array<i32>} : memref<8x32xf32, #tpu.memory_space<vmem>>, vector<8x8xf32>,
    %44 = vector.extract_strided_slice %19 {offsets = [0, 8], sizes = [8, 8], strides = [1, 1]} : vector<8x32xf32> to vector<8x8xf32>
    %45 = vector.extract_strided_slice %20 {offsets = [0, 8], sizes = [8, 8], strides = [1, 1]} : vector<8x32xf32> to vector<8x8xf32>
    %46 = vector.extract_strided_slice %21 {offsets = [0, 8], sizes = [8, 8], strides = [1, 1]} : vector<8x32xf32> to vector<8x8xf32>
    %cst_16 = arith.constant dense<0.000000e+00> : vector<8x8xf32>
    %47 = tpu.matmul %44, %45, %cst_16 {dimension_numbers = #tpu.dot_dimension_numbers<[1], [1], [0], [0], [0, 0, 1, 0], [], []>} : vector<8x8xf32>, vector<8x8xf32>, vector<8x8xf32> -> vector<8x8xf32>
    %cst_17 = arith.constant 0.353553385 : f32
    %48 = vector.broadcast %cst_17 : f32 to vector<8x8xf32>
    %49 = arith.mulf %47, %48 : vector<8x8xf32>
    %cst_18 = arith.constant dense<0xFF800000> : vector<8xf32>
    %50 = vector.multi_reduction <maximumf>, %49, %cst_18 [1] : vector<8x8xf32> to vector<8xf32>
    %51 = vector.shape_cast %50 : vector<8xf32> to vector<8x1xf32>
    %52 = vector.broadcast %51 : vector<8x1xf32> to vector<8x8xf32>
    %53 = arith.subf %49, %52 : vector<8x8xf32>
    %54 = math.exp %53 : vector<8x8xf32>
    %cst_19 = arith.constant dense<0.000000e+00> : vector<8xf32>
    %55 = vector.multi_reduction <add>, %54, %cst_19 [1] : vector<8x8xf32> to vector<8xf32>
    %56 = vector.shape_cast %55 : vector<8xf32> to vector<8x1xf32>
    %57 = tpu.reciprocal %56 {approx = true} : vector<8x1xf32> -> vector<8x1xf32>
    %58 = arith.mulf %56, %57 : vector<8x1xf32>
    %cst_20 = arith.constant 2.000000e+00 : f32
    %59 = vector.broadcast %cst_20 : f32 to vector<8x1xf32>
    %60 = arith.subf %59, %58 : vector<8x1xf32>
    %61 = arith.mulf %57, %60 : vector<8x1xf32>
    %62 = vector.broadcast %61 : vector<8x1xf32> to vector<8x8xf32>
    %63 = arith.mulf %54, %62 : vector<8x8xf32>
    %cst_21 = arith.constant dense<0.000000e+00> : vector<8x8xf32>
    %64 = tpu.matmul %63, %46, %cst_21 {dimension_numbers = #tpu.dot_dimension_numbers<[1], [0], [0], [1], [0, 0, 1, 1], [], []>} : vector<8x8xf32>, vector<8x8xf32>, vector<8x8xf32> -> vector<8x8xf32>
    %c0_22 = arith.constant 0 : index
    %c8 = arith.constant 8 : index
    %65 = vector.load %arg12[%c0_22, %c8] : memref<8x32xf32, #tpu.memory_space<vmem>>, vector<8x8xf32>
    tpu.vector_store %arg12[%c0_22, %c8], %64 {strides = array<i32>} : memref<8x32xf32, #tpu.memory_space<vmem>>, vector<8x8xf32>,
    %66 = vector.extract_strided_slice %19 {offsets = [0, 16], sizes = [8, 8], strides = [1, 1]} : vector<8x32xf32> to vector<8x8xf32>
    %67 = vector.extract_strided_slice %20 {offsets = [0, 16], sizes = [8, 8], strides = [1, 1]} : vector<8x32xf32> to vector<8x8xf32>
    %68 = vector.extract_strided_slice %21 {offsets = [0, 16], sizes = [8, 8], strides = [1, 1]} : vector<8x32xf32> to vector<8x8xf32>
    %cst_23 = arith.constant dense<0.000000e+00> : vector<8x8xf32>
    %69 = tpu.matmul %66, %67, %cst_23 {dimension_numbers = #tpu.dot_dimension_numbers<[1], [1], [0], [0], [0, 0, 1, 0], [], []>} : vector<8x8xf32>, vector<8x8xf32>, vector<8x8xf32> -> vector<8x8xf32>
    %cst_24 = arith.constant 0.353553385 : f32
    %70 = vector.broadcast %cst_24 : f32 to vector<8x8xf32>
    %71 = arith.mulf %69, %70 : vector<8x8xf32>
    %cst_25 = arith.constant dense<0xFF800000> : vector<8xf32>
    %72 = vector.multi_reduction <maximumf>, %71, %cst_25 [1] : vector<8x8xf32> to vector<8xf32>
    %73 = vector.shape_cast %72 : vector<8xf32> to vector<8x1xf32>
    %74 = vector.broadcast %73 : vector<8x1xf32> to vector<8x8xf32>
    %75 = arith.subf %71, %74 : vector<8x8xf32>
    %76 = math.exp %75 : vector<8x8xf32>
    %cst_26 = arith.constant dense<0.000000e+00> : vector<8xf32>
    %77 = vector.multi_reduction <add>, %76, %cst_26 [1] : vector<8x8xf32> to vector<8xf32>
    %78 = vector.shape_cast %77 : vector<8xf32> to vector<8x1xf32>
    %79 = tpu.reciprocal %78 {approx = true} : vector<8x1xf32> -> vector<8x1xf32>
    %80 = arith.mulf %78, %79 : vector<8x1xf32>
    %cst_27 = arith.constant 2.000000e+00 : f32
    %81 = vector.broadcast %cst_27 : f32 to vector<8x1xf32>
    %82 = arith.subf %81, %80 : vector<8x1xf32>
    %83 = arith.mulf %79, %82 : vector<8x1xf32>
    %84 = vector.broadcast %83 : vector<8x1xf32> to vector<8x8xf32>
    %85 = arith.mulf %76, %84 : vector<8x8xf32>
    %cst_28 = arith.constant dense<0.000000e+00> : vector<8x8xf32>
    %86 = tpu.matmul %85, %68, %cst_28 {dimension_numbers = #tpu.dot_dimension_numbers<[1], [0], [0], [1], [0, 0, 1, 1], [], []>} : vector<8x8xf32>, vector<8x8xf32>, vector<8x8xf32> -> vector<8x8xf32>
    %c0_29 = arith.constant 0 : index
    %c16 = arith.constant 16 : index
    %87 = vector.load %arg12[%c0_29, %c16] : memref<8x32xf32, #tpu.memory_space<vmem>>, vector<8x8xf32>
    tpu.vector_store %arg12[%c0_29, %c16], %86 {strides = array<i32>} : memref<8x32xf32, #tpu.memory_space<vmem>>, vector<8x8xf32>,
    %88 = vector.extract_strided_slice %19 {offsets = [0, 24], sizes = [8, 8], strides = [1, 1]} : vector<8x32xf32> to vector<8x8xf32>
    %89 = vector.extract_strided_slice %20 {offsets = [0, 24], sizes = [8, 8], strides = [1, 1]} : vector<8x32xf32> to vector<8x8xf32>
    %90 = vector.extract_strided_slice %21 {offsets = [0, 24], sizes = [8, 8], strides = [1, 1]} : vector<8x32xf32> to vector<8x8xf32>
    %cst_30 = arith.constant dense<0.000000e+00> : vector<8x8xf32>
    %91 = tpu.matmul %88, %89, %cst_30 {dimension_numbers = #tpu.dot_dimension_numbers<[1], [1], [0], [0], [0, 0, 1, 0], [], []>} : vector<8x8xf32>, vector<8x8xf32>, vector<8x8xf32> -> vector<8x8xf32>
    %cst_31 = arith.constant 0.353553385 : f32
    %92 = vector.broadcast %cst_31 : f32 to vector<8x8xf32>
    %93 = arith.mulf %91, %92 : vector<8x8xf32>
    %cst_32 = arith.constant dense<0xFF800000> : vector<8xf32>
    %94 = vector.multi_reduction <maximumf>, %93, %cst_32 [1] : vector<8x8xf32> to vector<8xf32>
    %95 = vector.shape_cast %94 : vector<8xf32> to vector<8x1xf32>
    %96 = vector.broadcast %95 : vector<8x1xf32> to vector<8x8xf32>
    %97 = arith.subf %93, %96 : vector<8x8xf32>
    %98 = math.exp %97 : vector<8x8xf32>
    %cst_33 = arith.constant dense<0.000000e+00> : vector<8xf32>
    %99 = vector.multi_reduction <add>, %98, %cst_33 [1] : vector<8x8xf32> to vector<8xf32>
    %100 = vector.shape_cast %99 : vector<8xf32> to vector<8x1xf32>
    %101 = tpu.reciprocal %100 {approx = true} : vector<8x1xf32> -> vector<8x1xf32>
    %102 = arith.mulf %100, %101 : vector<8x1xf32>
    %cst_34 = arith.constant 2.000000e+00 : f32
    %103 = vector.broadcast %cst_34 : f32 to vector<8x1xf32>
    %104 = arith.subf %103, %102 : vector<8x1xf32>
    %105 = arith.mulf %101, %104 : vector<8x1xf32>
    %106 = vector.broadcast %105 : vector<8x1xf32> to vector<8x8xf32>
    %107 = arith.mulf %98, %106 : vector<8x8xf32>
    %cst_35 = arith.constant dense<0.000000e+00> : vector<8x8xf32>
    %108 = tpu.matmul %107, %90, %cst_35 {dimension_numbers = #tpu.dot_dimension_numbers<[1], [0], [0], [1], [0, 0, 1, 1], [], []>} : vector<8x8xf32>, vector<8x8xf32>, vector<8x8xf32> -> vector<8x8xf32>
    %c0_36 = arith.constant 0 : index
    %c24 = arith.constant 24 : index
    %109 = vector.load %arg12[%c0_36, %c24] : memref<8x32xf32, #tpu.memory_space<vmem>>, vector<8x8xf32>
    tpu.vector_store %arg12[%c0_36, %c24], %108 {strides = array<i32>} : memref<8x32xf32, #tpu.memory_space<vmem>>, vector<8x8xf32>,
    %c0_37 = arith.constant 0 : index
    %c0_38 = arith.constant 0 : index
    %110 = vector.load %arg12[%c0_37, %c0_38] : memref<8x32xf32, #tpu.memory_space<vmem>>, vector<8x32xf32>
    %c0_39 = arith.constant 0 : index
    %c0_40 = arith.constant 0 : index
    %c0_41 = arith.constant 0 : index
    %111 = vector.load %arg4[%c0_39, %c0_40, %c0_41] : memref<1x32x32xf32, #tpu.memory_space<vmem>>, vector<1x32x32xf32>
    %112 = vector.shape_cast %111 : vector<1x32x32xf32> to vector<32x32xf32>
    %cst_42 = arith.constant dense<0.000000e+00> : vector<8x32xf32>
    %113 = tpu.matmul %110, %112, %cst_42 {dimension_numbers = #tpu.dot_dimension_numbers<[1], [0], [0], [1], [0, 0, 1, 1], [], []>} : vector<8x32xf32>, vector<32x32xf32>, vector<8x32xf32> -> vector<8x32xf32>
    %114 = vector.broadcast %7 : vector<1x32xf32> to vector<8x32xf32>
    %115 = arith.addf %113, %114 : vector<8x32xf32>
    %116 = arith.addf %3, %115 : vector<8x32xf32>
    %cst_43 = arith.constant dense<0.000000e+00> : vector<8xf32>
    %117 = vector.multi_reduction <add>, %116, %cst_43 [1] : vector<8x32xf32> to vector<8xf32>
    %118 = vector.shape_cast %117 : vector<8xf32> to vector<8x1xf32>
    %cst_44 = arith.constant 3.200000e+01 : f32
    %119 = vector.broadcast %cst_44 : f32 to vector<8x1xf32>
    %120 = arith.divf %118, %119 : vector<8x1xf32>
    %121 = vector.broadcast %120 : vector<8x1xf32> to vector<8x32xf32>
    %122 = arith.subf %116, %121 : vector<8x32xf32>
    %123 = arith.mulf %122, %122 : vector<8x32xf32>
    %cst_45 = arith.constant dense<0.000000e+00> : vector<8xf32>
    %124 = vector.multi_reduction <add>, %123, %cst_45 [1] : vector<8x32xf32> to vector<8xf32>
    %125 = vector.shape_cast %124 : vector<8xf32> to vector<8x1xf32>
    %cst_46 = arith.constant 3.200000e+01 : f32
    %126 = vector.broadcast %cst_46 : f32 to vector<8x1xf32>
    %127 = arith.divf %125, %126 : vector<8x1xf32>
    %128 = vector.broadcast %120 : vector<8x1xf32> to vector<8x32xf32>
    %129 = arith.subf %116, %128 : vector<8x32xf32>
    %cst_47 = arith.constant 9.99999974E-6 : f32
    %130 = vector.broadcast %cst_47 : f32 to vector<8x1xf32>
    %131 = arith.addf %127, %130 : vector<8x1xf32>
    %132 = math.rsqrt %131 : vector<8x1xf32>
    %133 = vector.broadcast %132 : vector<8x1xf32> to vector<8x32xf32>
    %134 = arith.mulf %129, %133 : vector<8x32xf32>
    %135 = vector.broadcast %8 : vector<1x32xf32> to vector<8x32xf32>
    %136 = arith.mulf %134, %135 : vector<8x32xf32>
    %137 = vector.broadcast %9 : vector<1x32xf32> to vector<8x32xf32>
    %138 = arith.addf %136, %137 : vector<8x32xf32>
    %c0_48 = arith.constant 0 : index
    %c0_49 = arith.constant 0 : index
    %c0_50 = arith.constant 0 : index
    %139 = vector.load %arg5[%c0_48, %c0_49, %c0_50] : memref<1x32x64xf32, #tpu.memory_space<vmem>>, vector<1x32x64xf32>
    %140 = vector.shape_cast %139 : vector<1x32x64xf32> to vector<32x64xf32>
    %cst_51 = arith.constant dense<0.000000e+00> : vector<8x64xf32>
    %141 = tpu.matmul %138, %140, %cst_51 {dimension_numbers = #tpu.dot_dimension_numbers<[1], [0], [0], [1], [0, 0, 1, 1], [], []>} : vector<8x32xf32>, vector<32x64xf32>, vector<8x64xf32> -> vector<8x64xf32>
    %142 = vector.broadcast %10 : vector<1x64xf32> to vector<8x64xf32>
    %143 = arith.addf %141, %142 : vector<8x64xf32>
    %cst_52 = arith.constant 0.000000e+00 : f32
    %144 = vector.broadcast %cst_52 : f32 to vector<8x64xf32>
    %145 = arith.maximumf %143, %144 : vector<8x64xf32>
    %c0_53 = arith.constant 0 : index
    %c0_54 = arith.constant 0 : index
    %c0_55 = arith.constant 0 : index
    %146 = vector.load %arg6[%c0_53, %c0_54, %c0_55] : memref<1x64x32xf32, #tpu.memory_space<vmem>>, vector<1x64x32xf32>
    %147 = vector.shape_cast %146 : vector<1x64x32xf32> to vector<64x32xf32>
    %cst_56 = arith.constant dense<0.000000e+00> : vector<8x32xf32>
    %148 = tpu.matmul %145, %147, %cst_56 {dimension_numbers = #tpu.dot_dimension_numbers<[1], [0], [0], [1], [0, 0, 1, 1], [], []>} : vector<8x64xf32>, vector<64x32xf32>, vector<8x32xf32> -> vector<8x32xf32>
    %149 = vector.broadcast %11 : vector<1x32xf32> to vector<8x32xf32>
    %150 = arith.addf %148, %149 : vector<8x32xf32>
    %151 = arith.addf %138, %150 : vector<8x32xf32>
    %cst_57 = arith.constant dense<0.000000e+00> : vector<8xf32>
    %152 = vector.multi_reduction <add>, %151, %cst_57 [1] : vector<8x32xf32> to vector<8xf32>
    %153 = vector.shape_cast %152 : vector<8xf32> to vector<8x1xf32>
    %cst_58 = arith.constant 3.200000e+01 : f32
    %154 = vector.broadcast %cst_58 : f32 to vector<8x1xf32>
    %155 = arith.divf %153, %154 : vector<8x1xf32>
    %156 = vector.broadcast %155 : vector<8x1xf32> to vector<8x32xf32>
    %157 = arith.subf %151, %156 : vector<8x32xf32>
    %158 = arith.mulf %157, %157 : vector<8x32xf32>
    %cst_59 = arith.constant dense<0.000000e+00> : vector<8xf32>
    %159 = vector.multi_reduction <add>, %158, %cst_59 [1] : vector<8x32xf32> to vector<8xf32>
    %160 = vector.shape_cast %159 : vector<8xf32> to vector<8x1xf32>
    %cst_60 = arith.constant 3.200000e+01 : f32
    %161 = vector.broadcast %cst_60 : f32 to vector<8x1xf32>
    %162 = arith.divf %160, %161 : vector<8x1xf32>
    %163 = vector.broadcast %155 : vector<8x1xf32> to vector<8x32xf32>
    %164 = arith.subf %151, %163 : vector<8x32xf32>
    %cst_61 = arith.constant 9.99999974E-6 : f32
    %165 = vector.broadcast %cst_61 : f32 to vector<8x1xf32>
    %166 = arith.addf %162, %165 : vector<8x1xf32>
    %167 = math.rsqrt %166 : vector<8x1xf32>
    %168 = vector.broadcast %167 : vector<8x1xf32> to vector<8x32xf32>
    %169 = arith.mulf %164, %168 : vector<8x32xf32>
    %170 = vector.broadcast %12 : vector<1x32xf32> to vector<8x32xf32>
    %171 = arith.mulf %169, %170 : vector<8x32xf32>
    %172 = vector.broadcast %13 : vector<1x32xf32> to vector<8x32xf32>
    %173 = arith.addf %171, %172 : vector<8x32xf32>
    %c0_62 = arith.constant 0 : index
    %c0_63 = arith.constant 0 : index
    %174 = vector.load %arg11[%c0_62, %c0_63] : memref<8x32xf32, #tpu.memory_space<vmem>>, vector<8x32xf32>
    tpu.vector_store %arg11[%c0_62, %c0_63], %173 {strides = array<i32>} : memref<8x32xf32, #tpu.memory_space<vmem>>, vector<8x32xf32>,
    %c1_i32 = arith.constant 1 : i32
    %175 = arith.cmpi eq, %arg1, %c1_i32 : i32
    %176 = arith.extui %175 : i1 to i32
    %c0_i32_64 = arith.constant 0 : i32
    %177 = arith.cmpi ne, %176, %c0_i32_64 : i32
    scf.if %177 {
      %c0_65 = arith.constant 0 : index
      %c0_66 = arith.constant 0 : index
      %178 = vector.load %arg8[%c0_65, %c0_66] : memref<32x128xf32, #tpu.memory_space<vmem>>, vector<32x128xf32>
      %cst_67 = arith.constant dense<0.000000e+00> : vector<8x128xf32>
      %179 = tpu.matmul %173, %178, %cst_67 {dimension_numbers = #tpu.dot_dimension_numbers<[1], [0], [0], [1], [0, 0, 1, 1], [], []>} : vector<8x32xf32>, vector<32x128xf32>, vector<8x128xf32> -> vector<8x128xf32>
      %c0_68 = arith.constant 0 : index
      %c0_69 = arith.constant 0 : index
      %180 = vector.load %arg9[%c0_68, %c0_69] : memref<1x128xf32, #tpu.memory_space<vmem>>, vector<1x128xf32>
      %181 = vector.broadcast %180 : vector<1x128xf32> to vector<8x128xf32>
      %182 = arith.addf %179, %181 : vector<8x128xf32>
      %c0_70 = arith.constant 0 : index
      %c0_71 = arith.constant 0 : index
      %183 = vector.load %arg10[%c0_70, %c0_71] : memref<8x128xf32, #tpu.memory_space<vmem>>, vector<8x128xf32>
      tpu.vector_store %arg10[%c0_70, %c0_71], %182 {strides = array<i32>} : memref<8x128xf32, #tpu.memory_space<vmem>>, vector<8x128xf32>,
    } else {
    }
    return
  }
  func.func @transform_0(%arg0: i32, %arg1: i32) -> (i32, i32) {
    %c0_i32 = arith.constant 0 : i32
    %c0_i32_0 = arith.constant 0 : i32
    return %arg0, %c0_i32 : i32, i32
  }
  func.func @transform_1(%arg0: i32, %arg1: i32) -> (i32, i32, i32) {
    %c0_i32 = arith.constant 0 : i32
    %c0_i32_0 = arith.constant 0 : i32
    %c0_i32_1 = arith.constant 0 : i32
    return %arg1, %c0_i32, %c0_i32_0 : i32, i32, i32
  }
  func.func @transform_2(%arg0: i32, %arg1: i32) -> (i32, i32, i32) {
    %c0_i32 = arith.constant 0 : i32
    %c0_i32_0 = arith.constant 0 : i32
    %c0_i32_1 = arith.constant 0 : i32
    return %arg1, %c0_i32, %c0_i32_0 : i32, i32, i32
  }
  func.func @transform_3(%arg0: i32, %arg1: i32) -> (i32, i32, i32) {
    %c0_i32 = arith.constant 0 : i32
    %c0_i32_0 = arith.constant 0 : i32
    %c0_i32_1 = arith.constant 0 : i32
    return %arg1, %c0_i32, %c0_i32_0 : i32, i32, i32
  }
  func.func @transform_4(%arg0: i32, %arg1: i32) -> (i32, i32, i32) {
    %c0_i32 = arith.constant 0 : i32
    %c0_i32_0 = arith.constant 0 : i32
    %c0_i32_1 = arith.constant 0 : i32
    return %arg1, %c0_i32, %c0_i32_0 : i32, i32, i32
  }
  func.func @transform_5(%arg0: i32, %arg1: i32) -> (i32, i32, i32) {
    %c0_i32 = arith.constant 0 : i32
    %c0_i32_0 = arith.constant 0 : i32
    %c0_i32_1 = arith.constant 0 : i32
    return %arg1, %c0_i32, %c0_i32_0 : i32, i32, i32
  }
  func.func @transform_6(%arg0: i32, %arg1: i32) -> (i32, i32) {
    %c0_i32 = arith.constant 0 : i32
    %c0_i32_0 = arith.constant 0 : i32
    %c0_i32_1 = arith.constant 0 : i32
    return %c0_i32, %c0_i32_0 : i32, i32
  }
  func.func @transform_7(%arg0: i32, %arg1: i32) -> (i32, i32) {
    %c0_i32 = arith.constant 0 : i32
    %c0_i32_0 = arith.constant 0 : i32
    %c0_i32_1 = arith.constant 0 : i32
    return %c0_i32, %c0_i32_0 : i32, i32
  }
  func.func @transform_8(%arg0: i32, %arg1: i32) -> (i32, i32) {
    %c0_i32 = arith.constant 0 : i32
    %c0_i32_0 = arith.constant 0 : i32
    return %arg0, %c0_i32 : i32, i32
  }
}

</mosaic_0001>

<llo_original>
// kernel: tpu_custom_call.1
$region0: #{tpu_custom_call.1}
  #allocation0 [shape = 'u32[]', space=smem, size = 0x4, offset = 0x4, fixed_abs, tag = 'smem constant byte address 0x4 - core index']
  #allocation1 [shape = 'u32[144,128]{1,0:T(1,128)}', space=vmem, size = 0x12000, scoped, tag = 'internal scratch']
  #allocation2 [shape = 'f32[8,32]{1,0:T(8,128)}', space=vmem, size = 0x1000, scoped, tag = 'scratch operand']
  #allocation3 [shape = 'f32[8,32]{1,0:T(8,128)}', space=vmem, size = 0x1000, scoped, tag = 'scratch operand']
  %s0 = inlined_call_operand.hbm [shape: f32[16,32], index: 0, kind: input, shape index: {}]
  %s1 = inlined_call_operand.vmem [shape: f32[2,32,96], index: 1, kind: input, shape index: {}]
  %s2 = inlined_call_operand.vmem [shape: f32[2,32,32], index: 2, kind: input, shape index: {}]
  %s3 = inlined_call_operand.vmem [shape: f32[2,32,64], index: 3, kind: input, shape index: {}]
  %s4 = inlined_call_operand.vmem [shape: f32[2,64,32], index: 4, kind: input, shape index: {}]
  %s5 = inlined_call_operand.hbm [shape: f32[2,8,128], index: 5, kind: input, shape index: {}]
  %s6 = inlined_call_operand.hbm [shape: f32[32,128], index: 6, kind: input, shape index: {}]
  %s7 = inlined_call_operand.vmem [shape: f32[1,128], index: 7, kind: input, shape index: {}]
  %s8 = inlined_call_operand.hbm [shape: f32[16,128], index: 8, kind: output, shape index: {}]
  %s9 = sld [smem:[#allocation0]]
  $region85: #{tpu_custom_call.1} parent=0
    _
  %s11 = ssub.s32 1, %s9
  %s12 = scalar_select 0, %s11, %s9
  $region1: #{tpu_custom_call.1} parent=0
    #allocation4 [shape = 'u8[8192]{0}', space=vmem, size = 0x2000, scoped, tag = 'input window, operand 0']
    #allocation5 [shape = 's32[2]{0}', space=sflag, size = 0x8, scoped, tag = 'scoped memory for tpu_custom_call.1']
    #allocation6 [shape = 's32[2]{0}', space=sflag, size = 0x8, scoped, tag = 'scoped memory for tpu_custom_call.1']
    #allocation7 [shape = 'u8[8192]{0}', space=vmem, size = 0x2000, scoped, tag = 'input window, operand 5']
    #allocation8 [shape = 's32[2]{0}', space=sflag, size = 0x8, scoped, tag = 'scoped memory for tpu_custom_call.1']
    #allocation9 [shape = 'u8[16384]{0}', space=vmem, size = 0x4000, scoped, tag = 'input window, operand 6, single buffered']
    #allocation10 [shape = 'u8[8192]{0}', space=vmem, size = 0x2000, scoped, tag = 'output window, operand 0']
    %13 = vsyncpa [#allocation5], 0
    %s14 = scalar_lea.sflag [#allocation5], 1
    %15 = vsyncpa %s14, 0
    %16 = vsyncpa [#allocation8], 0
    %s17 = scalar_lea.sflag [#allocation8], 1
    %18 = vsyncpa %s17, 0
    %19 = vsyncpa [#allocation6], 0
    %s20 = scalar_lea.sflag [#allocation6], 1
    %21 = vsyncpa %s20, 0
    loop: start=0, step=1, limit=6
    $region2: #{tpu_custom_call.1} parent=1 // loop_pre_header
      _
    $region3: #{tpu_custom_call.1} parent=1 // loop_header
      %s23 = sphi 0, %s27
      %p24 = scmp.ge.s32.totalorder %s23, 6
      %s30 = sphi 0, %s42
      %s31 = sphi 0, %s38
      %s32 = sphi 0, %s30
      %s33 = sphi 0, %s31
      %s34 = sphi 0, %s32
      %s35 = sphi 0, %s33
      %s45 = sphi 0, %s47
      %s48 = sphi 0, %s45
      %s49 = sphi 0, %s48
      %s65 = sphi 0, %s49
      %s71 = sphi 0, %s73
      %s74 = sphi 0, %s71
      %s75 = sphi 0, %s74
      %s91 = sphi 0, %s75
      %s97 = sphi 0, %s99
      %s100 = sphi 0, %s97
      %s101 = sphi 0, %s100
      %s117 = sphi 0, %s101
      %s123 = sphi 0, %s125
      %s126 = sphi 0, %s123
      %s127 = sphi 0, %s126
      %s143 = sphi 0, %s127
      %s149 = sphi 0, %s151
      %s152 = sphi 0, %s149
      %s153 = sphi 0, %s152
      %s169 = sphi 0, %s153
      %s175 = sphi 0, %s177
      %s178 = sphi 0, %s175
      %s179 = sphi 0, %s178
      %s195 = sphi 0, %s179
      %s199 = sphi 0, %s199
      %s201 = sphi 0, %s199
      %s202 = sphi 0, %s201
      %s216 = sphi 0, %s202
      %s220 = sphi 0, %s220
      %s222 = sphi 0, %s220
      %s223 = sphi 0, %s222
      %s237 = sphi 0, %s223
      %s243 = sphi 0, %s245
      %s246 = sphi 0, %s243
      %s247 = sphi 0, %s246
      %s263 = sphi 0, %s247
    $region4: #{tpu_custom_call.1} parent=1 // loop_header_branch
      %26 = sbr.rel (%p24) target = $region8
    $region5: #{tpu_custom_call.1} parent=1 // loop_body
      %s28 = ssub.s32 %s23, 1
      %s29 = ssub.s32 %s23, 2
      %s36 = sadd.s32 1, %s31
      %p37 = scmp.ge.s32.totalorder %s36, 2
      %s38 = scalar_select %p37, 0, %s36
      %s39 = sadd.s32 1, %s30
      %s40 = scalar_select %p37, %s39, %s30
      %p41 = scmp.ge.s32.totalorder %s40, 2
      %s42 = scalar_select %p41, 0, %s40
      %s43 = ssub.s32 %s30, %s42
      %p44 = scmp.eq.s32.totalorder %s43, 0
      %s46 = sadd.s32 %s45, 1
      %s47 = scalar_select %p44, %s45, %s46
      %p50 = pneg %p44
      %p51 = scmp.eq.s32.totalorder %s23, 3
      %p52 = por %p50, %p51
      %p53 = scmp.ne.s32.totalorder %s45, %s48
      %p54 = scmp.eq.s32.totalorder %s23, 0
      %p55 = por %p53, %p54
      %p56 = scmp.ne.s32.totalorder %s45, %s48
      %p57 = scmp.eq.s32.totalorder %s28, 3
      %p58 = por %p56, %p57
      %p59 = scmp.ne.s32.totalorder %s48, %s49
      %p60 = scmp.eq.s32.totalorder %s28, 0
      %p61 = por %p59, %p60
      %p62 = scmp.ne.s32.totalorder %s48, %s49
      %p63 = scmp.eq.s32.totalorder %s29, 3
      %p64 = por %p62, %p63
      %p66 = scmp.ne.s32.totalorder %s49, %s65
      %p67 = scmp.eq.s32.totalorder %s29, 0
      %p68 = por %p66, %p67
      %s69 = ssub.s32 %s31, %s38
      %p70 = scmp.eq.s32.totalorder %s69, 0
      %s72 = sadd.s32 %s71, 1
      %s73 = scalar_select %p70, %s71, %s72
      %p76 = pneg %p70
      %p77 = scmp.eq.s32.totalorder %s23, 3
      %p78 = por %p76, %p77
      %p79 = scmp.ne.s32.totalorder %s71, %s74
      %p80 = scmp.eq.s32.totalorder %s23, 0
      %p81 = por %p79, %p80
      %p82 = scmp.ne.s32.totalorder %s71, %s74
      %p83 = scmp.eq.s32.totalorder %s28, 3
      %p84 = por %p82, %p83
      %p85 = scmp.ne.s32.totalorder %s74, %s75
      %p86 = scmp.eq.s32.totalorder %s28, 0
      %p87 = por %p85, %p86
      %p88 = scmp.ne.s32.totalorder %s74, %s75
      %p89 = scmp.eq.s32.totalorder %s29, 3
      %p90 = por %p88, %p89
      %p92 = scmp.ne.s32.totalorder %s75, %s91
      %p93 = scmp.eq.s32.totalorder %s29, 0
      %p94 = por %p92, %p93
      %s95 = ssub.s32 %s31, %s38
      %p96 = scmp.eq.s32.totalorder %s95, 0
      %s98 = sadd.s32 %s97, 1
      %s99 = scalar_select %p96, %s97, %s98
      %p102 = pneg %p96
      %p103 = scmp.eq.s32.totalorder %s23, 3
      %p104 = por %p102, %p103
      %p105 = scmp.ne.s32.totalorder %s97, %s100
      %p106 = scmp.eq.s32.totalorder %s23, 0
      %p107 = por %p105, %p106
      %p108 = scmp.ne.s32.totalorder %s97, %s100
      %p109 = scmp.eq.s32.totalorder %s28, 3
      %p110 = por %p108, %p109
      %p111 = scmp.ne.s32.totalorder %s100, %s101
      %p112 = scmp.eq.s32.totalorder %s28, 0
      %p113 = por %p111, %p112
      %p114 = scmp.ne.s32.totalorder %s100, %s101
      %p115 = scmp.eq.s32.totalorder %s29, 3
      %p116 = por %p114, %p115
      %p118 = scmp.ne.s32.totalorder %s101, %s117
      %p119 = scmp.eq.s32.totalorder %s29, 0
      %p120 = por %p118, %p119
      %s121 = ssub.s32 %s31, %s38
      %p122 = scmp.eq.s32.totalorder %s121, 0
      %s124 = sadd.s32 %s123, 1
      %s125 = scalar_select %p122, %s123, %s124
      %p128 = pneg %p122
      %p129 = scmp.eq.s32.totalorder %s23, 3
      %p130 = por %p128, %p129
      %p131 = scmp.ne.s32.totalorder %s123, %s126
      %p132 = scmp.eq.s32.totalorder %s23, 0
      %p133 = por %p131, %p132
      %p134 = scmp.ne.s32.totalorder %s123, %s126
      %p135 = scmp.eq.s32.totalorder %s28, 3
      %p136 = por %p134, %p135
      %p137 = scmp.ne.s32.totalorder %s126, %s127
      %p138 = scmp.eq.s32.totalorder %s28, 0
      %p139 = por %p137, %p138
      %p140 = scmp.ne.s32.totalorder %s126, %s127
      %p141 = scmp.eq.s32.totalorder %s29, 3
      %p142 = por %p140, %p141
      %p144 = scmp.ne.s32.totalorder %s127, %s143
      %p145 = scmp.eq.s32.totalorder %s29, 0
      %p146 = por %p144, %p145
      %s147 = ssub.s32 %s31, %s38
      %p148 = scmp.eq.s32.totalorder %s147, 0
      %s150 = sadd.s32 %s149, 1
      %s151 = scalar_select %p148, %s149, %s150
      %p154 = pneg %p148
      %p155 = scmp.eq.s32.totalorder %s23, 3
      %p156 = por %p154, %p155
      %p157 = scmp.ne.s32.totalorder %s149, %s152
      %p158 = scmp.eq.s32.totalorder %s23, 0
      %p159 = por %p157, %p158
      %p160 = scmp.ne.s32.totalorder %s149, %s152
      %p161 = scmp.eq.s32.totalorder %s28, 3
      %p162 = por %p160, %p161
      %p163 = scmp.ne.s32.totalorder %s152, %s153
      %p164 = scmp.eq.s32.totalorder %s28, 0
      %p165 = por %p163, %p164
      %p166 = scmp.ne.s32.totalorder %s152, %s153
      %p167 = scmp.eq.s32.totalorder %s29, 3
      %p168 = por %p166, %p167
      %p170 = scmp.ne.s32.totalorder %s153, %s169
      %p171 = scmp.eq.s32.totalorder %s29, 0
      %p172 = por %p170, %p171
      %s173 = ssub.s32 %s31, %s38
      %p174 = scmp.eq.s32.totalorder %s173, 0
      %s176 = sadd.s32 %s175, 1
      %s177 = scalar_select %p174, %s175, %s176
      %p180 = pneg %p174
      %p181 = scmp.eq.s32.totalorder %s23, 3
      %p182 = por %p180, %p181
      %p183 = scmp.ne.s32.totalorder %s175, %s178
      %p184 = scmp.eq.s32.totalorder %s23, 0
      %p185 = por %p183, %p184
      %p186 = scmp.ne.s32.totalorder %s175, %s178
      %p187 = scmp.eq.s32.totalorder %s28, 3
      %p188 = por %p186, %p187
      %p189 = scmp.ne.s32.totalorder %s178, %s179
      %p190 = scmp.eq.s32.totalorder %s28, 0
      %p191 = por %p189, %p190
      %p192 = scmp.ne.s32.totalorder %s178, %s179
      %p193 = scmp.eq.s32.totalorder %s29, 3
      %p194 = por %p192, %p193
      %p196 = scmp.ne.s32.totalorder %s179, %s195
      %p197 = scmp.eq.s32.totalorder %s29, 0
      %p198 = por %p196, %p197
      %s200 = sadd.s32 %s199, 1
      %p203 = scmp.eq.s32.totalorder %s23, 3
      %p204 = scmp.ne.s32.totalorder %s199, %s201
      %p205 = scmp.eq.s32.totalorder %s23, 0
      %p206 = por %p204, %p205
      %p207 = scmp.ne.s32.totalorder %s199, %s201
      %p208 = scmp.eq.s32.totalorder %s28, 3
      %p209 = por %p207, %p208
      %p210 = scmp.ne.s32.totalorder %s201, %s202
      %p211 = scmp.eq.s32.totalorder %s28, 0
      %p212 = por %p210, %p211
      %p213 = scmp.ne.s32.totalorder %s201, %s202
      %p214 = scmp.eq.s32.totalorder %s29, 3
      %p215 = por %p213, %p214
      %p217 = scmp.ne.s32.totalorder %s202, %s216
      %p218 = scmp.eq.s32.totalorder %s29, 0
      %p219 = por %p217, %p218
      %s221 = sadd.s32 %s220, 1
      %p224 = scmp.eq.s32.totalorder %s23, 3
      %p225 = scmp.ne.s32.totalorder %s220, %s222
      %p226 = scmp.eq.s32.totalorder %s23, 0
      %p227 = por %p225, %p226
      %p228 = scmp.ne.s32.totalorder %s220, %s222
      %p229 = scmp.eq.s32.totalorder %s28, 3
      %p230 = por %p228, %p229
      %p231 = scmp.ne.s32.totalorder %s222, %s223
      %p232 = scmp.eq.s32.totalorder %s28, 0
      %p233 = por %p231, %p232
      %p234 = scmp.ne.s32.totalorder %s222, %s223
      %p235 = scmp.eq.s32.totalorder %s29, 3
      %p236 = por %p234, %p235
      %p238 = scmp.ne.s32.totalorder %s223, %s237
      %p239 = scmp.eq.s32.totalorder %s29, 0
      %p240 = por %p238, %p239
      %s241 = ssub.s32 %s30, %s42
      %p242 = scmp.eq.s32.totalorder %s241, 0
      %s244 = sadd.s32 %s243, 1
      %s245 = scalar_select %p242, %s243, %s244
      %p248 = pneg %p242
      %p249 = scmp.eq.s32.totalorder %s23, 3
      %p250 = por %p248, %p249
      %p251 = scmp.ne.s32.totalorder %s243, %s246
      %p252 = scmp.eq.s32.totalorder %s23, 0
      %p253 = por %p251, %p252
      %p254 = scmp.ne.s32.totalorder %s243, %s246
      %p255 = scmp.eq.s32.totalorder %s28, 3
      %p256 = por %p254, %p255
      %p257 = scmp.ne.s32.totalorder %s246, %s247
      %p258 = scmp.eq.s32.totalorder %s28, 0
      %p259 = por %p257, %p258
      %p260 = scmp.ne.s32.totalorder %s246, %s247
      %p261 = scmp.eq.s32.totalorder %s29, 3
      %p262 = por %p260, %p261
      %p264 = scmp.ne.s32.totalorder %s247, %s263
      %p265 = scmp.eq.s32.totalorder %s29, 0
      %p266 = por %p264, %p265
      %p267 = scmp.le.s32.totalorder 1, %s23
      %p268 = scmp.lt.s32.totalorder %s23, 5
      %p269 = pnand %p267, %p268
      %p270 = pneg %p269
      // Predicated region
      $region9: #{tpu_custom_call.1} parent=5 // pred_check
        _
      $region10: #{tpu_custom_call.1} parent=5 // pred_check_branch
        %272 = sbr.rel (%p269) target = $region12
      $region11: #{tpu_custom_call.1} parent=5 // pred_region
        %s273 = ssub.s32 %s23, 1
        // Predicated region
        $region13: #{tpu_custom_call.1} parent=11 // pred_check
          %p274 = pneg %p212
        $region14: #{tpu_custom_call.1} parent=11 // pred_check_branch
          %276 = sbr.rel (%p274) target = $region16
        $region15: #{tpu_custom_call.1} parent=11 // pred_region
          %s278 = ssub.s32 512, 512
          %279 = vsyncadd [#allocation8], %s278
          %s280 = sshll.u32 [#allocation9], 4
          %s281 = int_to_ptr.vmem [resolvable:$true] %s280
          %286 = dma.hbm_to_vmem [thread:$0]  %s6, 512, %s281, [#allocation8], 128, 128, 8
        $region16: #{tpu_custom_call.1} parent=11 // pred_fallthru
          _
        // Predicated region
        $region17: #{tpu_custom_call.1} parent=11 // pred_check
          %p287 = pneg %p233
        $region18: #{tpu_custom_call.1} parent=11 // pred_check_branch
          %289 = sbr.rel (%p287) target = $region20
        $region19: #{tpu_custom_call.1} parent=11 // pred_region
          _
        $region20: #{tpu_custom_call.1} parent=11 // pred_fallthru
          _
      $region12: #{tpu_custom_call.1} parent=5 // pred_fallthru
        _
      %p290 = scmp.lt.s32.totalorder %s23, 4
      // Predicated region
      $region21: #{tpu_custom_call.1} parent=5 // pred_check
        %p291 = pneg %p290
      $region22: #{tpu_custom_call.1} parent=5 // pred_check_branch
        %293 = sbr.rel (%p291) target = $region24
      $region23: #{tpu_custom_call.1} parent=5 // pred_region
        // Predicated region
        $region25: #{tpu_custom_call.1} parent=23 // pred_check
          %p294 = pneg %p55
        $region26: #{tpu_custom_call.1} parent=23 // pred_check_branch
          %296 = sbr.rel (%p294) target = $region28
        $region27: #{tpu_custom_call.1} parent=23 // pred_region
          %s297 = sand.u32 %s45, 1
          %s298 = scalar_lea.sflag [#allocation5], %s297
          %s299 = sand.u32 %s45, 1
          %s300 = smul.addr %s299, 8
          %s301 = scalar_lea.vmem [#allocation4], %s300
          %s303 = ssub.s32 128, 128
          %304 = vsyncadd %s298, %s303
          %s305 = smul.addr %s30, 128
          %s306 = scalar_lea.hbm %s0, %s305
          %s308 = sshll.u32 %s301, 4
          %s309 = int_to_ptr.vmem [resolvable:$true] %s308
          %311 = dma.hbm_to_vmem [thread:$0]  %s306, 128, %s309, %s298
        $region28: #{tpu_custom_call.1} parent=23 // pred_fallthru
          _
        // Predicated region
        $region29: #{tpu_custom_call.1} parent=23 // pred_check
          %p312 = pneg %p81
        $region30: #{tpu_custom_call.1} parent=23 // pred_check_branch
          %314 = sbr.rel (%p312) target = $region32
        $region31: #{tpu_custom_call.1} parent=23 // pred_region
          %p315 = scmp.lt.s32.totalorder %s31, 1
          %s316 = scalar_select %p315, %s31, 1
          %s317 = smul.addr %s316, 4
          %s318 = smul.addr %s317, 8
          %s319 = scalar_lea.vmem %s1, %s318
        $region32: #{tpu_custom_call.1} parent=23 // pred_fallthru
          _
        // Predicated region
        $region33: #{tpu_custom_call.1} parent=23 // pred_check
          %p320 = pneg %p107
        $region34: #{tpu_custom_call.1} parent=23 // pred_check_branch
          %322 = sbr.rel (%p320) target = $region36
        $region35: #{tpu_custom_call.1} parent=23 // pred_region
          %p323 = scmp.lt.s32.totalorder %s31, 1
          %s324 = scalar_select %p323, %s31, 1
          %s325 = smul.addr %s324, 4
          %s326 = smul.addr %s325, 8
          %s327 = scalar_lea.vmem %s2, %s326
        $region36: #{tpu_custom_call.1} parent=23 // pred_fallthru
          _
        // Predicated region
        $region37: #{tpu_custom_call.1} parent=23 // pred_check
          %p328 = pneg %p133
        $region38: #{tpu_custom_call.1} parent=23 // pred_check_branch
          %330 = sbr.rel (%p328) target = $region40
        $region39: #{tpu_custom_call.1} parent=23 // pred_region
          %p331 = scmp.lt.s32.totalorder %s31, 1
          %s332 = scalar_select %p331, %s31, 1
          %s333 = smul.addr %s332, 4
          %s334 = smul.addr %s333, 8
          %s335 = scalar_lea.vmem %s3, %s334
        $region40: #{tpu_custom_call.1} parent=23 // pred_fallthru
          _
        // Predicated region
        $region41: #{tpu_custom_call.1} parent=23 // pred_check
          %p336 = pneg %p159
        $region42: #{tpu_custom_call.1} parent=23 // pred_check_branch
          %338 = sbr.rel (%p336) target = $region44
        $region43: #{tpu_custom_call.1} parent=23 // pred_region
          %p339 = scmp.lt.s32.totalorder %s31, 1
          %s340 = scalar_select %p339, %s31, 1
          %s341 = smul.addr %s340, 8
          %s342 = smul.addr %s341, 8
          %s343 = scalar_lea.vmem %s4, %s342
        $region44: #{tpu_custom_call.1} parent=23 // pred_fallthru
          _
        // Predicated region
        $region45: #{tpu_custom_call.1} parent=23 // pred_check
          %p344 = pneg %p185
        $region46: #{tpu_custom_call.1} parent=23 // pred_check_branch
          %346 = sbr.rel (%p344) target = $region48
        $region47: #{tpu_custom_call.1} parent=23 // pred_region
          %s347 = sand.u32 %s23, 1
          %s348 = scalar_lea.sflag [#allocation8], %s347
          %s349 = sand.u32 %s175, 1
          %s350 = smul.addr %s349, 8
          %s351 = scalar_lea.vmem [#allocation7], %s350
          %s353 = ssub.s32 128, 128
          %354 = vsyncadd %s348, %s353
          %s355 = smul.addr %s31, 128
          %s356 = scalar_lea.hbm %s5, %s355
          %s358 = sshll.u32 %s351, 4
          %s359 = int_to_ptr.vmem [resolvable:$true] %s358
          %361 = dma.hbm_to_vmem [thread:$0]  %s356, 128, %s359, %s348
        $region48: #{tpu_custom_call.1} parent=23 // pred_fallthru
          _
      $region24: #{tpu_custom_call.1} parent=5 // pred_fallthru
        _
      %p362 = scmp.le.s32.totalorder 1, %s23
      %p363 = scmp.lt.s32.totalorder %s23, 5
      %p364 = pnand %p362, %p363
      %p365 = pneg %p364
      // Predicated region
      $region49: #{tpu_custom_call.1} parent=5 // pred_check
        _
      $region50: #{tpu_custom_call.1} parent=5 // pred_check_branch
        %367 = sbr.rel (%p364) target = $region52
      $region51: #{tpu_custom_call.1} parent=5 // pred_region
        %s368 = ssub.s32 %s23, 1
        %s369 = sand.u32 %s48, 1
        %s370 = scalar_lea.sflag [#allocation5], %s369
        %s371 = sand.u32 %s48, 1
        %s372 = smul.addr %s371, 8
        %s373 = scalar_lea.vmem [#allocation4], %s372
        // Predicated region
        $region53: #{tpu_custom_call.1} parent=51 // pred_check
          %p374 = pneg %p61
        $region54: #{tpu_custom_call.1} parent=51 // pred_check_branch
          %376 = sbr.rel (%p374) target = $region56
        $region55: #{tpu_custom_call.1} parent=51 // pred_region
          %377 = dma.done %s370, 128
        $region56: #{tpu_custom_call.1} parent=51 // pred_fallthru
          _
        %s378 = sand.u32 %s28, 1
        %s379 = scalar_lea.sflag [#allocation8], %s378
        %s380 = sand.u32 %s178, 1
        %s381 = smul.addr %s380, 8
        %s382 = scalar_lea.vmem [#allocation7], %s381
        // Predicated region
        $region57: #{tpu_custom_call.1} parent=51 // pred_check
          %p383 = pneg %p191
        $region58: #{tpu_custom_call.1} parent=51 // pred_check_branch
          %385 = sbr.rel (%p383) target = $region60
        $region59: #{tpu_custom_call.1} parent=51 // pred_region
          %386 = dma.done %s379, 128
        $region60: #{tpu_custom_call.1} parent=51 // pred_fallthru
          _
        // Predicated region
        $region61: #{tpu_custom_call.1} parent=51 // pred_check
          %p387 = pneg %p212
        $region62: #{tpu_custom_call.1} parent=51 // pred_check_branch
          %389 = sbr.rel (%p387) target = $region64
        $region63: #{tpu_custom_call.1} parent=51 // pred_region
          %390 = dma.done [#allocation8], 512
        $region64: #{tpu_custom_call.1} parent=51 // pred_fallthru
          _
        %s391 = sand.u32 %s48, 1
        %s392 = scalar_lea.sflag [#allocation5], %s391
        %s393 = sand.u32 %s48, 1
        %s394 = smul.addr %s393, 8
        %s395 = scalar_lea.vmem [#allocation4], %s394
        %p396 = pneg %p61
        %p397 = pneg %p58
        %p398 = scmp.lt.s32.totalorder %s33, 1
        %s399 = scalar_select %p398, %s33, 1
        %s400 = smul.addr %s399, 4
        %s401 = smul.addr %s400, 8
        %s402 = scalar_lea.vmem %s1, %s401
        %p403 = pneg %p87
        %p404 = pneg %p84
        %p405 = scmp.lt.s32.totalorder %s33, 1
        %s406 = scalar_select %p405, %s33, 1
        %s407 = smul.addr %s406, 4
        %s408 = smul.addr %s407, 8
        %s409 = scalar_lea.vmem %s2, %s408
        %p410 = pneg %p113
        %p411 = pneg %p110
        %p412 = scmp.lt.s32.totalorder %s33, 1
        %s413 = scalar_select %p412, %s33, 1
        %s414 = smul.addr %s413, 4
        %s415 = smul.addr %s414, 8
        %s416 = scalar_lea.vmem %s3, %s415
        %p417 = pneg %p139
        %p418 = pneg %p136
        %p419 = scmp.lt.s32.totalorder %s33, 1
        %s420 = scalar_select %p419, %s33, 1
        %s421 = smul.addr %s420, 8
        %s422 = smul.addr %s421, 8
        %s423 = scalar_lea.vmem %s4, %s422
        %p424 = pneg %p165
        %p425 = pneg %p162
        %s426 = sand.u32 %s28, 1
        %s427 = scalar_lea.sflag [#allocation8], %s426
        %s428 = sand.u32 %s178, 1
        %s429 = smul.addr %s428, 8
        %s430 = scalar_lea.vmem [#allocation7], %s429
        %p431 = pneg %p191
        %p432 = pneg %p188
        %p433 = pneg %p212
        %p434 = pneg %p209
        %p435 = pneg %p233
        %p436 = pneg %p230
        %p437 = pneg %p259
        %p438 = pneg %p256
        %s439 = sand.u32 %s246, 1
        %s440 = scalar_lea.sflag [#allocation6], %s439
        %s441 = sand.u32 %s246, 1
        %s442 = smul.addr %s441, 8
        %s443 = scalar_lea.vmem [#allocation10], %s442
        %p444 = scmp.lt.s32.totalorder %s33, 1
        %s445 = scalar_select %p444, %s33, 1
        %s446 = smul.addr %s445, 4
        %s447 = smul.addr %s446, 8
        %s448 = scalar_lea.vmem %s1, %s447
        %p449 = scmp.lt.s32.totalorder %s33, 1
        %s450 = scalar_select %p449, %s33, 1
        %s451 = smul.addr %s450, 4
        %s452 = smul.addr %s451, 8
        %s453 = scalar_lea.vmem %s2, %s452
        %p454 = scmp.lt.s32.totalorder %s33, 1
        %s455 = scalar_select %p454, %s33, 1
        %s456 = smul.addr %s455, 4
        %s457 = smul.addr %s456, 8
        %s458 = scalar_lea.vmem %s3, %s457
        %p459 = scmp.lt.s32.totalorder %s33, 1
        %s460 = scalar_select %p459, %s33, 1
        %s461 = smul.addr %s460, 8
        %s462 = smul.addr %s461, 8
        %s463 = scalar_lea.vmem %s4, %s462
        %p464 = scmp.eq.s32.totalorder %s33, 0
        // Predicated region
        $region65: #{tpu_custom_call.1} parent=51 // pred_check
          %p465 = pneg %p464
        $region66: #{tpu_custom_call.1} parent=51 // pred_check_branch
          %467 = sbr.rel (%p465) target = $region68
        $region67: #{tpu_custom_call.1} parent=51 // pred_region
          %v468 = vld [vmem:[%s373] sm:$0xff]
          %vm469 = vcmask 261120
          %470 = vst.msk [vmem:[#allocation2] sm:$0xff] %vm469, %v468
        $region68: #{tpu_custom_call.1} parent=51 // pred_fallthru
          _
        %v471 = vld [vmem:[#allocation2] sm:$0xff]
        %v472 = vld [vmem:[%s382] sm:$0xff]
        %v473 = vld [vmem:[%s448] sm:$0xff]
        %v474 = vld [vmem:[%s448 + $0x8] sm:$0xff]
        %v475 = vld [vmem:[%s448 + $0x10] sm:$0xff]
        %v476 = vld [vmem:[%s448 + $0x18] sm:$0xff]
        %v477 = vlaneseq
        %v478 = vshrl.u32 %v477, 7
        %v479 = vsub.s32 0, %v478
        %v480 = vrot.slane %v472, %v479
        %vm481 = vcmask 261120
        %v483 = vsel %vm481, %v471, 0
        %485 = vmatprep.subr.mxu0 0.0
        %486 = vmatpush1.msra.mxu0 0.0
        %487 = vmatprep.subr.mxu0 0.0
        %488 = vmatpush1.msra.mxu0 0.0
        %489 = vmatprep.subr.mxu0 0.0
        %490 = vmatpush1.msra.mxu0 0.0
        %491 = vmatprep.subr.mxu0 0.0
        %492 = vmatpush1.msra.mxu0 0.0
        %493 = vmatprep.subr.mxu0 0.0
        %494 = vmatpush1.msra.mxu0 0.0
        %495 = vmatprep.subr.mxu0 0.0
        %496 = vmatpush1.msra.mxu0 0.0
        %497 = vmatprep.subr.mxu0 0.0
        %498 = vmatpush1.msra.mxu0 0.0
        %499 = vmatprep.subr.mxu0 0.0
        %500 = vmatpush1.msra.mxu0 0.0
        %501 = vmatprep.subr.mxu0 0.0
        %502 = vmatpush1.msra.mxu0 0.0
        %503 = vmatprep.subr.mxu0 0.0
        %504 = vmatpush1.msra.mxu0 0.0
        %505 = vmatprep.subr.mxu0 0.0
        %506 = vmatpush1.msra.mxu0 0.0
        %507 = vmatprep.subr.mxu0 0.0
        %508 = vmatpush1.msra.mxu0 0.0
        %509 = vmatprep.subr.mxu0 0.0
        %510 = vmatpush1.msra.mxu0 %v476
        %511 = vmatprep.subr.mxu0 0.0
        %512 = vmatpush1.msra.mxu0 %v475
        %513 = vmatprep.subr.mxu0 0.0
        %514 = vmatpush1.msra.mxu0 %v474
        %515 = vmatprep.subr.mxu0 0.0
        %516 = vmatpush1.msra.mxu0 %v473
        %517 = vmatprep.subr.mxu0 0.0
        %518 = vmatpush2.msra.mxu0 0.0
        %519 = vmatprep.subr.mxu0 0.0
        %520 = vmatpush2.msra.mxu0 0.0
        %521 = vmatprep.subr.mxu0 0.0
        %522 = vmatpush2.msra.mxu0 0.0
        %523 = vmatprep.subr.mxu0 0.0
        %524 = vmatpush2.msra.mxu0 0.0
        %525 = vmatprep.subr.mxu0 0.0
        %526 = vmatpush2.msra.mxu0 0.0
        %527 = vmatprep.subr.mxu0 0.0
        %528 = vmatpush2.msra.mxu0 0.0
        %529 = vmatprep.subr.mxu0 0.0
        %530 = vmatpush2.msra.mxu0 0.0
        %531 = vmatprep.subr.mxu0 0.0
        %532 = vmatpush2.msra.mxu0 0.0
        %533 = vmatprep.subr.mxu0 0.0
        %534 = vmatpush2.msra.mxu0 0.0
        %535 = vmatprep.subr.mxu0 0.0
        %536 = vmatpush2.msra.mxu0 0.0
        %537 = vmatprep.subr.mxu0 0.0
        %538 = vmatpush2.msra.mxu0 0.0
        %539 = vmatprep.subr.mxu0 0.0
        %540 = vmatpush2.msra.mxu0 0.0
        %541 = vmatprep.subr.mxu0 0.0
        %542 = vmatpush2.msra.mxu0 0.0
        %543 = vmatprep.subr.mxu0 0.0
        %544 = vmatpush2.msra.mxu0 0.0
        %545 = vmatprep.subr.mxu0 0.0
        %546 = vmatpush2.msra.mxu0 0.0
        %547 = vmatprep.subr.mxu0 0.0
        %548 = vmatpush2.msra.mxu0 0.0
        %549 = vmatprep.mubr.f32.mxu0 0.0
        %550 = vmatmul.mubr.f32.gmra.mxu0 %v483
        %v551 = vpop.f32.mrf.mxu0
        %v552 = vadd.f32 %v480, %v551
        %v553 = vpop.f32.mrf.mxu0
        %554 = vdwg.mxu0
        %556 = vrot.lane.b32.xlu0 %v552, 96
        %v557 = vpop.permute.xlu0 %556
        %vm558 = vcmask 64512
        %v559 = vsel %vm558, %v552, 0
        %v561 = vsel %vm558, %v557, 0
        %563 = vmatprep.subr.mxu0 0.0
        %564 = vmatpush1.xpose.msra.mxu0 0.0
        %565 = vmatprep.subr.mxu0 0.0
        %566 = vmatpush1.xpose.msra.mxu0 0.0
        %567 = vmatprep.subr.mxu0 0.0
        %568 = vmatpush1.xpose.msra.mxu0 0.0
        %569 = vmatprep.subr.mxu0 0.0
        %570 = vmatpush1.xpose.msra.mxu0 0.0
        %571 = vmatprep.subr.mxu0 0.0
        %572 = vmatpush1.xpose.msra.mxu0 0.0
        %573 = vmatprep.subr.mxu0 0.0
        %574 = vmatpush1.xpose.msra.mxu0 0.0
        %575 = vmatprep.subr.mxu0 0.0
        %576 = vmatpush1.xpose.msra.mxu0 0.0
        %577 = vmatprep.subr.mxu0 0.0
        %578 = vmatpush1.xpose.msra.mxu0 0.0
        %579 = vmatprep.subr.mxu0 0.0
        %580 = vmatpush1.xpose.msra.mxu0 0.0
        %581 = vmatprep.subr.mxu0 0.0
        %582 = vmatpush1.xpose.msra.mxu0 0.0
        %583 = vmatprep.subr.mxu0 0.0
        %584 = vmatpush1.xpose.msra.mxu0 0.0
        %585 = vmatprep.subr.mxu0 0.0
        %586 = vmatpush1.xpose.msra.mxu0 0.0
        %587 = vmatprep.subr.mxu0 0.0
        %588 = vmatpush1.xpose.msra.mxu0 0.0
        %589 = vmatprep.subr.mxu0 0.0
        %590 = vmatpush1.xpose.msra.mxu0 0.0
        %591 = vmatprep.subr.mxu0 0.0
        %592 = vmatpush1.xpose.msra.mxu0 0.0
        %593 = vmatprep.subr.mxu0 0.0
        %594 = vmatpush1.xpose.msra.mxu0 %v561
        %595 = vmatprep.subr.mxu0 0.0
        %596 = vmatpush2.xpose.msra.mxu0 0.0
        %597 = vmatprep.subr.mxu0 0.0
        %598 = vmatpush2.xpose.msra.mxu0 0.0
        %599 = vmatprep.subr.mxu0 0.0
        %600 = vmatpush2.xpose.msra.mxu0 0.0
        %601 = vmatprep.subr.mxu0 0.0
        %602 = vmatpush2.xpose.msra.mxu0 0.0
        %603 = vmatprep.subr.mxu0 0.0
        %604 = vmatpush2.xpose.msra.mxu0 0.0
        %605 = vmatprep.subr.mxu0 0.0
        %606 = vmatpush2.xpose.msra.mxu0 0.0
        %607 = vmatprep.subr.mxu0 0.0
        %608 = vmatpush2.xpose.msra.mxu0 0.0
        %609 = vmatprep.subr.mxu0 0.0
        %610 = vmatpush2.xpose.msra.mxu0 0.0
        %611 = vmatprep.subr.mxu0 0.0
        %612 = vmatpush2.xpose.msra.mxu0 0.0
        %613 = vmatprep.subr.mxu0 0.0
        %614 = vmatpush2.xpose.msra.mxu0 0.0
        %615 = vmatprep.subr.mxu0 0.0
        %616 = vmatpush2.xpose.msra.mxu0 0.0
        %617 = vmatprep.subr.mxu0 0.0
        %618 = vmatpush2.xpose.msra.mxu0 0.0
        %619 = vmatprep.subr.mxu0 0.0
        %620 = vmatpush2.xpose.msra.mxu0 0.0
        %621 = vmatprep.subr.mxu0 0.0
        %622 = vmatpush2.xpose.msra.mxu0 0.0
        %623 = vmatprep.subr.mxu0 0.0
        %624 = vmatpush2.xpose.msra.mxu0 0.0
        %625 = vmatprep.subr.mxu0 0.0
        %626 = vmatpush2.xpose.msra.mxu0 0.0
        %627 = vmatprep.mubr.f32.mxu0 0.0
        %628 = vmatmul.mubr.f32.gmra.mxu0 %v559
        %v629 = vpop.f32.mrf.mxu0
        %v630 = vadd.f32 0.0, %v629
        %v631 = vpop.f32.mrf.mxu0
        %632 = vdwg.mxu0
        %v633 = vmul.f32 %v630, 0.35355338
        %v634 = vsel %vm558, %v633, -inf
        %635 = vmax.xlane.f32.xlu0 %v634
        %v636 = vpop.xlane.xlu0 %635
        %v637 = vsub.f32 %v633, %v636
        %v638 = vmul.f32 %v637, 1.442695
        %v639 = vpow.pop %v638
        %v640 = vsel %vm558, %v639, 0.0
        %641 = vadd.xlane.f32.xlu0 %v640
        %v642 = vpop.xlane.xlu0 %641
        %v643 = vrcp.pop %v642
        %v644 = vmul.f32 %v642, %v643
        %v645 = vsub.f32 2.0, %v644
        %v646 = vmul.f32 %v643, %v645
        %v647 = vmul.f32 %v639, %v646
        %648 = vrot.lane.b32.xlu0 %v552, 64
        %v649 = vpop.permute.xlu0 %648
        %v652 = vsel %vm558, %v647, 0
        %654 = vmatprep.subr.mxu0 0.0
        %655 = vmatpush1.msra.mxu0 0.0
        %656 = vmatprep.subr.mxu0 0.0
        %657 = vmatpush1.msra.mxu0 0.0
        %658 = vmatprep.subr.mxu0 0.0
        %659 = vmatpush1.msra.mxu0 0.0
        %660 = vmatprep.subr.mxu0 0.0
        %661 = vmatpush1.msra.mxu0 0.0
        %662 = vmatprep.subr.mxu0 0.0
        %663 = vmatpush1.msra.mxu0 0.0
        %664 = vmatprep.subr.mxu0 0.0
        %665 = vmatpush1.msra.mxu0 0.0
        %666 = vmatprep.subr.mxu0 0.0
        %667 = vmatpush1.msra.mxu0 0.0
        %668 = vmatprep.subr.mxu0 0.0
        %669 = vmatpush1.msra.mxu0 0.0
        %670 = vmatprep.subr.mxu0 0.0
        %671 = vmatpush1.msra.mxu0 0.0
        %672 = vmatprep.subr.mxu0 0.0
        %673 = vmatpush1.msra.mxu0 0.0
        %674 = vmatprep.subr.mxu0 0.0
        %675 = vmatpush1.msra.mxu0 0.0
        %676 = vmatprep.subr.mxu0 0.0
        %677 = vmatpush1.msra.mxu0 0.0
        %678 = vmatprep.subr.mxu0 0.0
        %679 = vmatpush1.msra.mxu0 0.0
        %680 = vmatprep.subr.mxu0 0.0
        %681 = vmatpush1.msra.mxu0 0.0
        %682 = vmatprep.subr.mxu0 0.0
        %683 = vmatpush1.msra.mxu0 0.0
        %684 = vmatprep.subr.mxu0 0.0
        %685 = vmatpush1.msra.mxu0 %v649
        %686 = vmatprep.subr.mxu0 0.0
        %687 = vmatpush2.msra.mxu0 0.0
        %688 = vmatprep.subr.mxu0 0.0
        %689 = vmatpush2.msra.mxu0 0.0
        %690 = vmatprep.subr.mxu0 0.0
        %691 = vmatpush2.msra.mxu0 0.0
        %692 = vmatprep.subr.mxu0 0.0
        %693 = vmatpush2.msra.mxu0 0.0
        %694 = vmatprep.subr.mxu0 0.0
        %695 = vmatpush2.msra.mxu0 0.0
        %696 = vmatprep.subr.mxu0 0.0
        %697 = vmatpush2.msra.mxu0 0.0
        %698 = vmatprep.subr.mxu0 0.0
        %699 = vmatpush2.msra.mxu0 0.0
        %700 = vmatprep.subr.mxu0 0.0
        %701 = vmatpush2.msra.mxu0 0.0
        %702 = vmatprep.subr.mxu0 0.0
        %703 = vmatpush2.msra.mxu0 0.0
        %704 = vmatprep.subr.mxu0 0.0
        %705 = vmatpush2.msra.mxu0 0.0
        %706 = vmatprep.subr.mxu0 0.0
        %707 = vmatpush2.msra.mxu0 0.0
        %708 = vmatprep.subr.mxu0 0.0
        %709 = vmatpush2.msra.mxu0 0.0
        %710 = vmatprep.subr.mxu0 0.0
        %711 = vmatpush2.msra.mxu0 0.0
        %712 = vmatprep.subr.mxu0 0.0
        %713 = vmatpush2.msra.mxu0 0.0
        %714 = vmatprep.subr.mxu0 0.0
        %715 = vmatpush2.msra.mxu0 0.0
        %716 = vmatprep.subr.mxu0 0.0
        %717 = vmatpush2.msra.mxu0 0.0
        %718 = vmatprep.mubr.f32.mxu0 0.0
        %719 = vmatmul.mubr.f32.gmra.mxu0 %v652
        %v720 = vpop.f32.mrf.mxu0
        %v721 = vadd.f32 0.0, %v720
        %v722 = vpop.f32.mrf.mxu0
        %723 = vdwg.mxu0
        %724 = vst.msk [vmem:[#allocation3] sm:$0xff] %vm558, %v721
        %725 = vrot.lane.b32.xlu0 %v552, 120
        %v726 = vpop.permute.xlu0 %725
        %727 = vrot.lane.b32.xlu0 %v552, 88
        %v728 = vpop.permute.xlu0 %727
        %v729 = vsel %vm558, %v726, 0
        %v731 = vsel %vm558, %v728, 0
        %733 = vmatprep.subr.mxu0 0.0
        %734 = vmatpush1.xpose.msra.mxu0 0.0
        %735 = vmatprep.subr.mxu0 0.0
        %736 = vmatpush1.xpose.msra.mxu0 0.0
        %737 = vmatprep.subr.mxu0 0.0
        %738 = vmatpush1.xpose.msra.mxu0 0.0
        %739 = vmatprep.subr.mxu0 0.0
        %740 = vmatpush1.xpose.msra.mxu0 0.0
        %741 = vmatprep.subr.mxu0 0.0
        %742 = vmatpush1.xpose.msra.mxu0 0.0
        %743 = vmatprep.subr.mxu0 0.0
        %744 = vmatpush1.xpose.msra.mxu0 0.0
        %745 = vmatprep.subr.mxu0 0.0
        %746 = vmatpush1.xpose.msra.mxu0 0.0
        %747 = vmatprep.subr.mxu0 0.0
        %748 = vmatpush1.xpose.msra.mxu0 0.0
        %749 = vmatprep.subr.mxu0 0.0
        %750 = vmatpush1.xpose.msra.mxu0 0.0
        %751 = vmatprep.subr.mxu0 0.0
        %752 = vmatpush1.xpose.msra.mxu0 0.0
        %753 = vmatprep.subr.mxu0 0.0
        %754 = vmatpush1.xpose.msra.mxu0 0.0
        %755 = vmatprep.subr.mxu0 0.0
        %756 = vmatpush1.xpose.msra.mxu0 0.0
        %757 = vmatprep.subr.mxu0 0.0
        %758 = vmatpush1.xpose.msra.mxu0 0.0
        %759 = vmatprep.subr.mxu0 0.0
        %760 = vmatpush1.xpose.msra.mxu0 0.0
        %761 = vmatprep.subr.mxu0 0.0
        %762 = vmatpush1.xpose.msra.mxu0 0.0
        %763 = vmatprep.subr.mxu0 0.0
        %764 = vmatpush1.xpose.msra.mxu0 %v731
        %765 = vmatprep.subr.mxu0 0.0
        %766 = vmatpush2.xpose.msra.mxu0 0.0
        %767 = vmatprep.subr.mxu0 0.0
        %768 = vmatpush2.xpose.msra.mxu0 0.0
        %769 = vmatprep.subr.mxu0 0.0
        %770 = vmatpush2.xpose.msra.mxu0 0.0
        %771 = vmatprep.subr.mxu0 0.0
        %772 = vmatpush2.xpose.msra.mxu0 0.0
        %773 = vmatprep.subr.mxu0 0.0
        %774 = vmatpush2.xpose.msra.mxu0 0.0
        %775 = vmatprep.subr.mxu0 0.0
        %776 = vmatpush2.xpose.msra.mxu0 0.0
        %777 = vmatprep.subr.mxu0 0.0
        %778 = vmatpush2.xpose.msra.mxu0 0.0
        %779 = vmatprep.subr.mxu0 0.0
        %780 = vmatpush2.xpose.msra.mxu0 0.0
        %781 = vmatprep.subr.mxu0 0.0
        %782 = vmatpush2.xpose.msra.mxu0 0.0
        %783 = vmatprep.subr.mxu0 0.0
        %784 = vmatpush2.xpose.msra.mxu0 0.0
        %785 = vmatprep.subr.mxu0 0.0
        %786 = vmatpush2.xpose.msra.mxu0 0.0
        %787 = vmatprep.subr.mxu0 0.0
        %788 = vmatpush2.xpose.msra.mxu0 0.0
        %789 = vmatprep.subr.mxu0 0.0
        %790 = vmatpush2.xpose.msra.mxu0 0.0
        %791 = vmatprep.subr.mxu0 0.0
        %792 = vmatpush2.xpose.msra.mxu0 0.0
        %793 = vmatprep.subr.mxu0 0.0
        %794 = vmatpush2.xpose.msra.mxu0 0.0
        %795 = vmatprep.subr.mxu0 0.0
        %796 = vmatpush2.xpose.msra.mxu0 0.0
        %797 = vmatprep.mubr.f32.mxu0 0.0
        %798 = vmatmul.mubr.f32.gmra.mxu0 %v729
        %v799 = vpop.f32.mrf.mxu0
        %v800 = vadd.f32 0.0, %v799
        %v801 = vpop.f32.mrf.mxu0
        %802 = vdwg.mxu0
        %v803 = vmul.f32 %v800, 0.35355338
        %v804 = vsel %vm558, %v803, -inf
        %805 = vmax.xlane.f32.xlu0 %v804
        %v806 = vpop.xlane.xlu0 %805
        %v807 = vsub.f32 %v803, %v806
        %v808 = vmul.f32 %v807, 1.442695
        %v809 = vpow.pop %v808
        %v810 = vsel %vm558, %v809, 0.0
        %811 = vadd.xlane.f32.xlu0 %v810
        %v812 = vpop.xlane.xlu0 %811
        %v813 = vrcp.pop %v812
        %v814 = vmul.f32 %v812, %v813
        %v815 = vsub.f32 2.0, %v814
        %v816 = vmul.f32 %v813, %v815
        %v817 = vmul.f32 %v809, %v816
        %818 = vrot.lane.b32.xlu0 %v552, 56
        %v819 = vpop.permute.xlu0 %818
        %v822 = vsel %vm558, %v817, 0
        %824 = vmatprep.subr.mxu0 0.0
        %825 = vmatpush1.msra.mxu0 0.0
        %826 = vmatprep.subr.mxu0 0.0
        %827 = vmatpush1.msra.mxu0 0.0
        %828 = vmatprep.subr.mxu0 0.0
        %829 = vmatpush1.msra.mxu0 0.0
        %830 = vmatprep.subr.mxu0 0.0
        %831 = vmatpush1.msra.mxu0 0.0
        %832 = vmatprep.subr.mxu0 0.0
        %833 = vmatpush1.msra.mxu0 0.0
        %834 = vmatprep.subr.mxu0 0.0
        %835 = vmatpush1.msra.mxu0 0.0
        %836 = vmatprep.subr.mxu0 0.0
        %837 = vmatpush1.msra.mxu0 0.0
        %838 = vmatprep.subr.mxu0 0.0
        %839 = vmatpush1.msra.mxu0 0.0
        %840 = vmatprep.subr.mxu0 0.0
        %841 = vmatpush1.msra.mxu0 0.0
        %842 = vmatprep.subr.mxu0 0.0
        %843 = vmatpush1.msra.mxu0 0.0
        %844 = vmatprep.subr.mxu0 0.0
        %845 = vmatpush1.msra.mxu0 0.0
        %846 = vmatprep.subr.mxu0 0.0
        %847 = vmatpush1.msra.mxu0 0.0
        %848 = vmatprep.subr.mxu0 0.0
        %849 = vmatpush1.msra.mxu0 0.0
        %850 = vmatprep.subr.mxu0 0.0
        %851 = vmatpush1.msra.mxu0 0.0
        %852 = vmatprep.subr.mxu0 0.0
        %853 = vmatpush1.msra.mxu0 0.0
        %854 = vmatprep.subr.mxu0 0.0
        %855 = vmatpush1.msra.mxu0 %v819
        %856 = vmatprep.subr.mxu0 0.0
        %857 = vmatpush2.msra.mxu0 0.0
        %858 = vmatprep.subr.mxu0 0.0
        %859 = vmatpush2.msra.mxu0 0.0
        %860 = vmatprep.subr.mxu0 0.0
        %861 = vmatpush2.msra.mxu0 0.0
        %862 = vmatprep.subr.mxu0 0.0
        %863 = vmatpush2.msra.mxu0 0.0
        %864 = vmatprep.subr.mxu0 0.0
        %865 = vmatpush2.msra.mxu0 0.0
        %866 = vmatprep.subr.mxu0 0.0
        %867 = vmatpush2.msra.mxu0 0.0
        %868 = vmatprep.subr.mxu0 0.0
        %869 = vmatpush2.msra.mxu0 0.0
        %870 = vmatprep.subr.mxu0 0.0
        %871 = vmatpush2.msra.mxu0 0.0
        %872 = vmatprep.subr.mxu0 0.0
        %873 = vmatpush2.msra.mxu0 0.0
        %874 = vmatprep.subr.mxu0 0.0
        %875 = vmatpush2.msra.mxu0 0.0
        %876 = vmatprep.subr.mxu0 0.0
        %877 = vmatpush2.msra.mxu0 0.0
        %878 = vmatprep.subr.mxu0 0.0
        %879 = vmatpush2.msra.mxu0 0.0
        %880 = vmatprep.subr.mxu0 0.0
        %881 = vmatpush2.msra.mxu0 0.0
        %882 = vmatprep.subr.mxu0 0.0
        %883 = vmatpush2.msra.mxu0 0.0
        %884 = vmatprep.subr.mxu0 0.0
        %885 = vmatpush2.msra.mxu0 0.0
        %886 = vmatprep.subr.mxu0 0.0
        %887 = vmatpush2.msra.mxu0 0.0
        %888 = vmatprep.mubr.f32.mxu0 0.0
        %889 = vmatmul.mubr.f32.gmra.mxu0 %v822
        %v890 = vpop.f32.mrf.mxu0
        %v891 = vadd.f32 0.0, %v890
        %v892 = vpop.f32.mrf.mxu0
        %893 = vdwg.mxu0
        %895 = vrot.lane.b32.xlu0 %v891, 8
        %v896 = vpop.permute.xlu0 %895
        %vm898 = vcmask 130112
        %899 = vst.msk [vmem:[#allocation3] sm:$0xff] %vm898, %v896
        %900 = vrot.lane.b32.xlu0 %v552, 112
        %v901 = vpop.permute.xlu0 %900
        %902 = vrot.lane.b32.xlu0 %v552, 80
        %v903 = vpop.permute.xlu0 %902
        %v904 = vsel %vm558, %v901, 0
        %v906 = vsel %vm558, %v903, 0
        %908 = vmatprep.subr.mxu0 0.0
        %909 = vmatpush1.xpose.msra.mxu0 0.0
        %910 = vmatprep.subr.mxu0 0.0
        %911 = vmatpush1.xpose.msra.mxu0 0.0
        %912 = vmatprep.subr.mxu0 0.0
        %913 = vmatpush1.xpose.msra.mxu0 0.0
        %914 = vmatprep.subr.mxu0 0.0
        %915 = vmatpush1.xpose.msra.mxu0 0.0
        %916 = vmatprep.subr.mxu0 0.0
        %917 = vmatpush1.xpose.msra.mxu0 0.0
        %918 = vmatprep.subr.mxu0 0.0
        %919 = vmatpush1.xpose.msra.mxu0 0.0
        %920 = vmatprep.subr.mxu0 0.0
        %921 = vmatpush1.xpose.msra.mxu0 0.0
        %922 = vmatprep.subr.mxu0 0.0
        %923 = vmatpush1.xpose.msra.mxu0 0.0
        %924 = vmatprep.subr.mxu0 0.0
        %925 = vmatpush1.xpose.msra.mxu0 0.0
        %926 = vmatprep.subr.mxu0 0.0
        %927 = vmatpush1.xpose.msra.mxu0 0.0
        %928 = vmatprep.subr.mxu0 0.0
        %929 = vmatpush1.xpose.msra.mxu0 0.0
        %930 = vmatprep.subr.mxu0 0.0
        %931 = vmatpush1.xpose.msra.mxu0 0.0
        %932 = vmatprep.subr.mxu0 0.0
        %933 = vmatpush1.xpose.msra.mxu0 0.0
        %934 = vmatprep.subr.mxu0 0.0
        %935 = vmatpush1.xpose.msra.mxu0 0.0
        %936 = vmatprep.subr.mxu0 0.0
        %937 = vmatpush1.xpose.msra.mxu0 0.0
        %938 = vmatprep.subr.mxu0 0.0
        %939 = vmatpush1.xpose.msra.mxu0 %v906
        %940 = vmatprep.subr.mxu0 0.0
        %941 = vmatpush2.xpose.msra.mxu0 0.0
        %942 = vmatprep.subr.mxu0 0.0
        %943 = vmatpush2.xpose.msra.mxu0 0.0
        %944 = vmatprep.subr.mxu0 0.0
        %945 = vmatpush2.xpose.msra.mxu0 0.0
        %946 = vmatprep.subr.mxu0 0.0
        %947 = vmatpush2.xpose.msra.mxu0 0.0
        %948 = vmatprep.subr.mxu0 0.0
        %949 = vmatpush2.xpose.msra.mxu0 0.0
        %950 = vmatprep.subr.mxu0 0.0
        %951 = vmatpush2.xpose.msra.mxu0 0.0
        %952 = vmatprep.subr.mxu0 0.0
        %953 = vmatpush2.xpose.msra.mxu0 0.0
        %954 = vmatprep.subr.mxu0 0.0
        %955 = vmatpush2.xpose.msra.mxu0 0.0
        %956 = vmatprep.subr.mxu0 0.0
        %957 = vmatpush2.xpose.msra.mxu0 0.0
        %958 = vmatprep.subr.mxu0 0.0
        %959 = vmatpush2.xpose.msra.mxu0 0.0
        %960 = vmatprep.subr.mxu0 0.0
        %961 = vmatpush2.xpose.msra.mxu0 0.0
        %962 = vmatprep.subr.mxu0 0.0
        %963 = vmatpush2.xpose.msra.mxu0 0.0
        %964 = vmatprep.subr.mxu0 0.0
        %965 = vmatpush2.xpose.msra.mxu0 0.0
        %966 = vmatprep.subr.mxu0 0.0
        %967 = vmatpush2.xpose.msra.mxu0 0.0
        %968 = vmatprep.subr.mxu0 0.0
        %969 = vmatpush2.xpose.msra.mxu0 0.0
        %970 = vmatprep.subr.mxu0 0.0
        %971 = vmatpush2.xpose.msra.mxu0 0.0
        %972 = vmatprep.mubr.f32.mxu0 0.0
        %973 = vmatmul.mubr.f32.gmra.mxu0 %v904
        %v974 = vpop.f32.mrf.mxu0
        %v975 = vadd.f32 0.0, %v974
        %v976 = vpop.f32.mrf.mxu0
        %977 = vdwg.mxu0
        %v978 = vmul.f32 %v975, 0.35355338
        %v979 = vsel %vm558, %v978, -inf
        %980 = vmax.xlane.f32.xlu0 %v979
        %v981 = vpop.xlane.xlu0 %980
        %v982 = vsub.f32 %v978, %v981
        %v983 = vmul.f32 %v982, 1.442695
        %v984 = vpow.pop %v983
        %v985 = vsel %vm558, %v984, 0.0
        %986 = vadd.xlane.f32.xlu0 %v985
        %v987 = vpop.xlane.xlu0 %986
        %v988 = vrcp.pop %v987
        %v989 = vmul.f32 %v987, %v988
        %v990 = vsub.f32 2.0, %v989
        %v991 = vmul.f32 %v988, %v990
        %v992 = vmul.f32 %v984, %v991
        %993 = vrot.lane.b32.xlu0 %v552, 48
        %v994 = vpop.permute.xlu0 %993
        %v997 = vsel %vm558, %v992, 0
        %999 = vmatprep.subr.mxu0 0.0
        %1000 = vmatpush1.msra.mxu0 0.0
        %1001 = vmatprep.subr.mxu0 0.0
        %1002 = vmatpush1.msra.mxu0 0.0
        %1003 = vmatprep.subr.mxu0 0.0
        %1004 = vmatpush1.msra.mxu0 0.0
        %1005 = vmatprep.subr.mxu0 0.0
        %1006 = vmatpush1.msra.mxu0 0.0
        %1007 = vmatprep.subr.mxu0 0.0
        %1008 = vmatpush1.msra.mxu0 0.0
        %1009 = vmatprep.subr.mxu0 0.0
        %1010 = vmatpush1.msra.mxu0 0.0
        %1011 = vmatprep.subr.mxu0 0.0
        %1012 = vmatpush1.msra.mxu0 0.0
        %1013 = vmatprep.subr.mxu0 0.0
        %1014 = vmatpush1.msra.mxu0 0.0
        %1015 = vmatprep.subr.mxu0 0.0
        %1016 = vmatpush1.msra.mxu0 0.0
        %1017 = vmatprep.subr.mxu0 0.0
        %1018 = vmatpush1.msra.mxu0 0.0
        %1019 = vmatprep.subr.mxu0 0.0
        %1020 = vmatpush1.msra.mxu0 0.0
        %1021 = vmatprep.subr.mxu0 0.0
        %1022 = vmatpush1.msra.mxu0 0.0
        %1023 = vmatprep.subr.mxu0 0.0
        %1024 = vmatpush1.msra.mxu0 0.0
        %1025 = vmatprep.subr.mxu0 0.0
        %1026 = vmatpush1.msra.mxu0 0.0
        %1027 = vmatprep.subr.mxu0 0.0
        %1028 = vmatpush1.msra.mxu0 0.0
        %1029 = vmatprep.subr.mxu0 0.0
        %1030 = vmatpush1.msra.mxu0 %v994
        %1031 = vmatprep.subr.mxu0 0.0
        %1032 = vmatpush2.msra.mxu0 0.0
        %1033 = vmatprep.subr.mxu0 0.0
        %1034 = vmatpush2.msra.mxu0 0.0
        %1035 = vmatprep.subr.mxu0 0.0
        %1036 = vmatpush2.msra.mxu0 0.0
        %1037 = vmatprep.subr.mxu0 0.0
        %1038 = vmatpush2.msra.mxu0 0.0
        %1039 = vmatprep.subr.mxu0 0.0
        %1040 = vmatpush2.msra.mxu0 0.0
        %1041 = vmatprep.subr.mxu0 0.0
        %1042 = vmatpush2.msra.mxu0 0.0
        %1043 = vmatprep.subr.mxu0 0.0
        %1044 = vmatpush2.msra.mxu0 0.0
        %1045 = vmatprep.subr.mxu0 0.0
        %1046 = vmatpush2.msra.mxu0 0.0
        %1047 = vmatprep.subr.mxu0 0.0
        %1048 = vmatpush2.msra.mxu0 0.0
        %1049 = vmatprep.subr.mxu0 0.0
        %1050 = vmatpush2.msra.mxu0 0.0
        %1051 = vmatprep.subr.mxu0 0.0
        %1052 = vmatpush2.msra.mxu0 0.0
        %1053 = vmatprep.subr.mxu0 0.0
        %1054 = vmatpush2.msra.mxu0 0.0
        %1055 = vmatprep.subr.mxu0 0.0
        %1056 = vmatpush2.msra.mxu0 0.0
        %1057 = vmatprep.subr.mxu0 0.0
        %1058 = vmatpush2.msra.mxu0 0.0
        %1059 = vmatprep.subr.mxu0 0.0
        %1060 = vmatpush2.msra.mxu0 0.0
        %1061 = vmatprep.subr.mxu0 0.0
        %1062 = vmatpush2.msra.mxu0 0.0
        %1063 = vmatprep.mubr.f32.mxu0 0.0
        %1064 = vmatmul.mubr.f32.gmra.mxu0 %v997
        %v1065 = vpop.f32.mrf.mxu0
        %v1066 = vadd.f32 0.0, %v1065
        %v1067 = vpop.f32.mrf.mxu0
        %1068 = vdwg.mxu0
        %1070 = vrot.lane.b32.xlu0 %v1066, 16
        %v1071 = vpop.permute.xlu0 %1070
        %vm1073 = vcmask 195712
        %1074 = vst.msk [vmem:[#allocation3] sm:$0xff] %vm1073, %v1071
        %1075 = vrot.lane.b32.xlu0 %v552, 104
        %v1076 = vpop.permute.xlu0 %1075
        %1077 = vrot.lane.b32.xlu0 %v552, 72
        %v1078 = vpop.permute.xlu0 %1077
        %v1079 = vsel %vm558, %v1076, 0
        %v1081 = vsel %vm558, %v1078, 0
        %1083 = vmatprep.subr.mxu0 0.0
        %1084 = vmatpush1.xpose.msra.mxu0 0.0
        %1085 = vmatprep.subr.mxu0 0.0
        %1086 = vmatpush1.xpose.msra.mxu0 0.0
        %1087 = vmatprep.subr.mxu0 0.0
        %1088 = vmatpush1.xpose.msra.mxu0 0.0
        %1089 = vmatprep.subr.mxu0 0.0
        %1090 = vmatpush1.xpose.msra.mxu0 0.0
        %1091 = vmatprep.subr.mxu0 0.0
        %1092 = vmatpush1.xpose.msra.mxu0 0.0
        %1093 = vmatprep.subr.mxu0 0.0
        %1094 = vmatpush1.xpose.msra.mxu0 0.0
        %1095 = vmatprep.subr.mxu0 0.0
        %1096 = vmatpush1.xpose.msra.mxu0 0.0
        %1097 = vmatprep.subr.mxu0 0.0
        %1098 = vmatpush1.xpose.msra.mxu0 0.0
        %1099 = vmatprep.subr.mxu0 0.0
        %1100 = vmatpush1.xpose.msra.mxu0 0.0
        %1101 = vmatprep.subr.mxu0 0.0
        %1102 = vmatpush1.xpose.msra.mxu0 0.0
        %1103 = vmatprep.subr.mxu0 0.0
        %1104 = vmatpush1.xpose.msra.mxu0 0.0
        %1105 = vmatprep.subr.mxu0 0.0
        %1106 = vmatpush1.xpose.msra.mxu0 0.0
        %1107 = vmatprep.subr.mxu0 0.0
        %1108 = vmatpush1.xpose.msra.mxu0 0.0
        %1109 = vmatprep.subr.mxu0 0.0
        %1110 = vmatpush1.xpose.msra.mxu0 0.0
        %1111 = vmatprep.subr.mxu0 0.0
        %1112 = vmatpush1.xpose.msra.mxu0 0.0
        %1113 = vmatprep.subr.mxu0 0.0
        %1114 = vmatpush1.xpose.msra.mxu0 %v1081
        %1115 = vmatprep.subr.mxu0 0.0
        %1116 = vmatpush2.xpose.msra.mxu0 0.0
        %1117 = vmatprep.subr.mxu0 0.0
        %1118 = vmatpush2.xpose.msra.mxu0 0.0
        %1119 = vmatprep.subr.mxu0 0.0
        %1120 = vmatpush2.xpose.msra.mxu0 0.0
        %1121 = vmatprep.subr.mxu0 0.0
        %1122 = vmatpush2.xpose.msra.mxu0 0.0
        %1123 = vmatprep.subr.mxu0 0.0
        %1124 = vmatpush2.xpose.msra.mxu0 0.0
        %1125 = vmatprep.subr.mxu0 0.0
        %1126 = vmatpush2.xpose.msra.mxu0 0.0
        %1127 = vmatprep.subr.mxu0 0.0
        %1128 = vmatpush2.xpose.msra.mxu0 0.0
        %1129 = vmatprep.subr.mxu0 0.0
        %1130 = vmatpush2.xpose.msra.mxu0 0.0
        %1131 = vmatprep.subr.mxu0 0.0
        %1132 = vmatpush2.xpose.msra.mxu0 0.0
        %1133 = vmatprep.subr.mxu0 0.0
        %1134 = vmatpush2.xpose.msra.mxu0 0.0
        %1135 = vmatprep.subr.mxu0 0.0
        %1136 = vmatpush2.xpose.msra.mxu0 0.0
        %1137 = vmatprep.subr.mxu0 0.0
        %1138 = vmatpush2.xpose.msra.mxu0 0.0
        %1139 = vmatprep.subr.mxu0 0.0
        %1140 = vmatpush2.xpose.msra.mxu0 0.0
        %1141 = vmatprep.subr.mxu0 0.0
        %1142 = vmatpush2.xpose.msra.mxu0 0.0
        %1143 = vmatprep.subr.mxu0 0.0
        %1144 = vmatpush2.xpose.msra.mxu0 0.0
        %1145 = vmatprep.subr.mxu0 0.0
        %1146 = vmatpush2.xpose.msra.mxu0 0.0
        %1147 = vmatprep.mubr.f32.mxu0 0.0
        %1148 = vmatmul.mubr.f32.gmra.mxu0 %v1079
        %v1149 = vpop.f32.mrf.mxu0
        %v1150 = vadd.f32 0.0, %v1149
        %v1151 = vpop.f32.mrf.mxu0
        %1152 = vdwg.mxu0
        %v1153 = vmul.f32 %v1150, 0.35355338
        %v1154 = vsel %vm558, %v1153, -inf
        %1155 = vmax.xlane.f32.xlu0 %v1154
        %v1156 = vpop.xlane.xlu0 %1155
        %v1157 = vsub.f32 %v1153, %v1156
        %v1158 = vmul.f32 %v1157, 1.442695
        %v1159 = vpow.pop %v1158
        %v1160 = vsel %vm558, %v1159, 0.0
        %1161 = vadd.xlane.f32.xlu0 %v1160
        %v1162 = vpop.xlane.xlu0 %1161
        %v1163 = vrcp.pop %v1162
        %v1164 = vmul.f32 %v1162, %v1163
        %v1165 = vsub.f32 2.0, %v1164
        %v1166 = vmul.f32 %v1163, %v1165
        %v1167 = vmul.f32 %v1159, %v1166
        %1168 = vrot.lane.b32.xlu0 %v552, 40
        %v1169 = vpop.permute.xlu0 %1168
        %v1172 = vsel %vm558, %v1167, 0
        %1174 = vmatprep.subr.mxu0 0.0
        %1175 = vmatpush1.msra.mxu0 0.0
        %1176 = vmatprep.subr.mxu0 0.0
        %1177 = vmatpush1.msra.mxu0 0.0
        %1178 = vmatprep.subr.mxu0 0.0
        %1179 = vmatpush1.msra.mxu0 0.0
        %1180 = vmatprep.subr.mxu0 0.0
        %1181 = vmatpush1.msra.mxu0 0.0
        %1182 = vmatprep.subr.mxu0 0.0
        %1183 = vmatpush1.msra.mxu0 0.0
        %1184 = vmatprep.subr.mxu0 0.0
        %1185 = vmatpush1.msra.mxu0 0.0
        %1186 = vmatprep.subr.mxu0 0.0
        %1187 = vmatpush1.msra.mxu0 0.0
        %1188 = vmatprep.subr.mxu0 0.0
        %1189 = vmatpush1.msra.mxu0 0.0
        %1190 = vmatprep.subr.mxu0 0.0
        %1191 = vmatpush1.msra.mxu0 0.0
        %1192 = vmatprep.subr.mxu0 0.0
        %1193 = vmatpush1.msra.mxu0 0.0
        %1194 = vmatprep.subr.mxu0 0.0
        %1195 = vmatpush1.msra.mxu0 0.0
        %1196 = vmatprep.subr.mxu0 0.0
        %1197 = vmatpush1.msra.mxu0 0.0
        %1198 = vmatprep.subr.mxu0 0.0
        %1199 = vmatpush1.msra.mxu0 0.0
        %1200 = vmatprep.subr.mxu0 0.0
        %1201 = vmatpush1.msra.mxu0 0.0
        %1202 = vmatprep.subr.mxu0 0.0
        %1203 = vmatpush1.msra.mxu0 0.0
        %1204 = vmatprep.subr.mxu0 0.0
        %1205 = vmatpush1.msra.mxu0 %v1169
        %1206 = vmatprep.subr.mxu0 0.0
        %1207 = vmatpush2.msra.mxu0 0.0
        %1208 = vmatprep.subr.mxu0 0.0
        %1209 = vmatpush2.msra.mxu0 0.0
        %1210 = vmatprep.subr.mxu0 0.0
        %1211 = vmatpush2.msra.mxu0 0.0
        %1212 = vmatprep.subr.mxu0 0.0
        %1213 = vmatpush2.msra.mxu0 0.0
        %1214 = vmatprep.subr.mxu0 0.0
        %1215 = vmatpush2.msra.mxu0 0.0
        %1216 = vmatprep.subr.mxu0 0.0
        %1217 = vmatpush2.msra.mxu0 0.0
        %1218 = vmatprep.subr.mxu0 0.0
        %1219 = vmatpush2.msra.mxu0 0.0
        %1220 = vmatprep.subr.mxu0 0.0
        %1221 = vmatpush2.msra.mxu0 0.0
        %1222 = vmatprep.subr.mxu0 0.0
        %1223 = vmatpush2.msra.mxu0 0.0
        %1224 = vmatprep.subr.mxu0 0.0
        %1225 = vmatpush2.msra.mxu0 0.0
        %1226 = vmatprep.subr.mxu0 0.0
        %1227 = vmatpush2.msra.mxu0 0.0
        %1228 = vmatprep.subr.mxu0 0.0
        %1229 = vmatpush2.msra.mxu0 0.0
        %1230 = vmatprep.subr.mxu0 0.0
        %1231 = vmatpush2.msra.mxu0 0.0
        %1232 = vmatprep.subr.mxu0 0.0
        %1233 = vmatpush2.msra.mxu0 0.0
        %1234 = vmatprep.subr.mxu0 0.0
        %1235 = vmatpush2.msra.mxu0 0.0
        %1236 = vmatprep.subr.mxu0 0.0
        %1237 = vmatpush2.msra.mxu0 0.0
        %1238 = vmatprep.mubr.f32.mxu0 0.0
        %1239 = vmatmul.mubr.f32.gmra.mxu0 %v1172
        %v1240 = vpop.f32.mrf.mxu0
        %v1241 = vadd.f32 0.0, %v1240
        %v1242 = vpop.f32.mrf.mxu0
        %1243 = vdwg.mxu0
        %1245 = vrot.lane.b32.xlu0 %v1241, 24
        %v1246 = vpop.permute.xlu0 %1245
        %vm1248 = vcmask 261312
        %1249 = vst.msk [vmem:[#allocation3] sm:$0xff] %vm1248, %v1246
        %v1250 = vld [vmem:[#allocation3] sm:$0xff]
        %v1251 = vld [vmem:[%s453] sm:$0xff]
        %v1252 = vld [vmem:[%s453 + $0x8] sm:$0xff]
        %v1253 = vld [vmem:[%s453 + $0x10] sm:$0xff]
        %v1254 = vld [vmem:[%s453 + $0x18] sm:$0xff]
        %v1255 = vlaneseq
        %v1256 = vshrl.u32 %v1255, 7
        %v1257 = vsub.s32 1, %v1256
        %v1258 = vrot.slane %v472, %v1257
        %v1260 = vsel %vm481, %v1250, 0
        %1262 = vmatprep.subr.mxu0 0.0
        %1263 = vmatpush1.msra.mxu0 0.0
        %1264 = vmatprep.subr.mxu0 0.0
        %1265 = vmatpush1.msra.mxu0 0.0
        %1266 = vmatprep.subr.mxu0 0.0
        %1267 = vmatpush1.msra.mxu0 0.0
        %1268 = vmatprep.subr.mxu0 0.0
        %1269 = vmatpush1.msra.mxu0 0.0
        %1270 = vmatprep.subr.mxu0 0.0
        %1271 = vmatpush1.msra.mxu0 0.0
        %1272 = vmatprep.subr.mxu0 0.0
        %1273 = vmatpush1.msra.mxu0 0.0
        %1274 = vmatprep.subr.mxu0 0.0
        %1275 = vmatpush1.msra.mxu0 0.0
        %1276 = vmatprep.subr.mxu0 0.0
        %1277 = vmatpush1.msra.mxu0 0.0
        %1278 = vmatprep.subr.mxu0 0.0
        %1279 = vmatpush1.msra.mxu0 0.0
        %1280 = vmatprep.subr.mxu0 0.0
        %1281 = vmatpush1.msra.mxu0 0.0
        %1282 = vmatprep.subr.mxu0 0.0
        %1283 = vmatpush1.msra.mxu0 0.0
        %1284 = vmatprep.subr.mxu0 0.0
        %1285 = vmatpush1.msra.mxu0 0.0
        %1286 = vmatprep.subr.mxu0 0.0
        %1287 = vmatpush1.msra.mxu0 %v1254
        %1288 = vmatprep.subr.mxu0 0.0
        %1289 = vmatpush1.msra.mxu0 %v1253
        %1290 = vmatprep.subr.mxu0 0.0
        %1291 = vmatpush1.msra.mxu0 %v1252
        %1292 = vmatprep.subr.mxu0 0.0
        %1293 = vmatpush1.msra.mxu0 %v1251
        %1294 = vmatprep.subr.mxu0 0.0
        %1295 = vmatpush2.msra.mxu0 0.0
        %1296 = vmatprep.subr.mxu0 0.0
        %1297 = vmatpush2.msra.mxu0 0.0
        %1298 = vmatprep.subr.mxu0 0.0
        %1299 = vmatpush2.msra.mxu0 0.0
        %1300 = vmatprep.subr.mxu0 0.0
        %1301 = vmatpush2.msra.mxu0 0.0
        %1302 = vmatprep.subr.mxu0 0.0
        %1303 = vmatpush2.msra.mxu0 0.0
        %1304 = vmatprep.subr.mxu0 0.0
        %1305 = vmatpush2.msra.mxu0 0.0
        %1306 = vmatprep.subr.mxu0 0.0
        %1307 = vmatpush2.msra.mxu0 0.0
        %1308 = vmatprep.subr.mxu0 0.0
        %1309 = vmatpush2.msra.mxu0 0.0
        %1310 = vmatprep.subr.mxu0 0.0
        %1311 = vmatpush2.msra.mxu0 0.0
        %1312 = vmatprep.subr.mxu0 0.0
        %1313 = vmatpush2.msra.mxu0 0.0
        %1314 = vmatprep.subr.mxu0 0.0
        %1315 = vmatpush2.msra.mxu0 0.0
        %1316 = vmatprep.subr.mxu0 0.0
        %1317 = vmatpush2.msra.mxu0 0.0
        %1318 = vmatprep.subr.mxu0 0.0
        %1319 = vmatpush2.msra.mxu0 0.0
        %1320 = vmatprep.subr.mxu0 0.0
        %1321 = vmatpush2.msra.mxu0 0.0
        %1322 = vmatprep.subr.mxu0 0.0
        %1323 = vmatpush2.msra.mxu0 0.0
        %1324 = vmatprep.subr.mxu0 0.0
        %1325 = vmatpush2.msra.mxu0 0.0
        %1326 = vmatprep.mubr.f32.mxu0 0.0
        %1327 = vmatmul.mubr.f32.gmra.mxu0 %v1260
        %v1328 = vpop.f32.mrf.mxu0
        %v1329 = vadd.f32 %v1258, %v1328
        %v1330 = vpop.f32.mrf.mxu0
        %1331 = vdwg.mxu0
        %v1332 = vadd.f32 %v471, %v1329
        %v1333 = vsel %vm481, %v1332, 0.0
        %1334 = vadd.xlane.f32.xlu0 %v1333
        %v1335 = vpop.xlane.xlu0 %1334
        %v1336 = vrcp.pop 32.0
        %v1337 = vmul.f32 %v1335, %v1336
        %v1338 = vsub.f32 %v1332, %v1337
        %v1339 = vmul.f32 %v1338, %v1338
        %v1340 = vsel %vm481, %v1339, 0.0
        %1341 = vadd.xlane.f32.xlu0 %v1340
        %v1342 = vpop.xlane.xlu0 %1341
        %v1343 = vmul.f32 %v1342, %v1336
        %v1344 = vadd.f32 %v1343, 1e-05
        %v1345 = vrsqrt.pop %v1344
        %v1346 = vmul.f32 %v1338, %v1345
        %v1347 = vlaneseq
        %v1348 = vshrl.u32 %v1347, 7
        %v1349 = vsub.s32 2, %v1348
        %v1350 = vrot.slane %v472, %v1349
        %v1351 = vmul.f32 %v1346, %v1350
        %v1352 = vlaneseq
        %v1353 = vshrl.u32 %v1352, 7
        %v1354 = vsub.s32 3, %v1353
        %v1355 = vrot.slane %v472, %v1354
        %v1356 = vadd.f32 %v1351, %v1355
        %v1357 = vld [vmem:[%s458] sm:$0xff]
        %v1358 = vld [vmem:[%s458 + $0x8] sm:$0xff]
        %v1359 = vld [vmem:[%s458 + $0x10] sm:$0xff]
        %v1360 = vld [vmem:[%s458 + $0x18] sm:$0xff]
        %v1361 = vlaneseq
        %v1362 = vshrl.u32 %v1361, 7
        %v1363 = vsub.s32 4, %v1362
        %v1364 = vrot.slane %v472, %v1363
        %v1366 = vsel %vm481, %v1356, 0
        %1368 = vmatprep.subr.mxu0 0.0
        %1369 = vmatpush1.msra.mxu0 0.0
        %1370 = vmatprep.subr.mxu0 0.0
        %1371 = vmatpush1.msra.mxu0 0.0
        %1372 = vmatprep.subr.mxu0 0.0
        %1373 = vmatpush1.msra.mxu0 0.0
        %1374 = vmatprep.subr.mxu0 0.0
        %1375 = vmatpush1.msra.mxu0 0.0
        %1376 = vmatprep.subr.mxu0 0.0
        %1377 = vmatpush1.msra.mxu0 0.0
        %1378 = vmatprep.subr.mxu0 0.0
        %1379 = vmatpush1.msra.mxu0 0.0
        %1380 = vmatprep.subr.mxu0 0.0
        %1381 = vmatpush1.msra.mxu0 0.0
        %1382 = vmatprep.subr.mxu0 0.0
        %1383 = vmatpush1.msra.mxu0 0.0
        %1384 = vmatprep.subr.mxu0 0.0
        %1385 = vmatpush1.msra.mxu0 0.0
        %1386 = vmatprep.subr.mxu0 0.0
        %1387 = vmatpush1.msra.mxu0 0.0
        %1388 = vmatprep.subr.mxu0 0.0
        %1389 = vmatpush1.msra.mxu0 0.0
        %1390 = vmatprep.subr.mxu0 0.0
        %1391 = vmatpush1.msra.mxu0 0.0
        %1392 = vmatprep.subr.mxu0 0.0
        %1393 = vmatpush1.msra.mxu0 %v1360
        %1394 = vmatprep.subr.mxu0 0.0
        %1395 = vmatpush1.msra.mxu0 %v1359
        %1396 = vmatprep.subr.mxu0 0.0
        %1397 = vmatpush1.msra.mxu0 %v1358
        %1398 = vmatprep.subr.mxu0 0.0
        %1399 = vmatpush1.msra.mxu0 %v1357
        %1400 = vmatprep.subr.mxu0 0.0
        %1401 = vmatpush2.msra.mxu0 0.0
        %1402 = vmatprep.subr.mxu0 0.0
        %1403 = vmatpush2.msra.mxu0 0.0
        %1404 = vmatprep.subr.mxu0 0.0
        %1405 = vmatpush2.msra.mxu0 0.0
        %1406 = vmatprep.subr.mxu0 0.0
        %1407 = vmatpush2.msra.mxu0 0.0
        %1408 = vmatprep.subr.mxu0 0.0
        %1409 = vmatpush2.msra.mxu0 0.0
        %1410 = vmatprep.subr.mxu0 0.0
        %1411 = vmatpush2.msra.mxu0 0.0
        %1412 = vmatprep.subr.mxu0 0.0
        %1413 = vmatpush2.msra.mxu0 0.0
        %1414 = vmatprep.subr.mxu0 0.0
        %1415 = vmatpush2.msra.mxu0 0.0
        %1416 = vmatprep.subr.mxu0 0.0
        %1417 = vmatpush2.msra.mxu0 0.0
        %1418 = vmatprep.subr.mxu0 0.0
        %1419 = vmatpush2.msra.mxu0 0.0
        %1420 = vmatprep.subr.mxu0 0.0
        %1421 = vmatpush2.msra.mxu0 0.0
        %1422 = vmatprep.subr.mxu0 0.0
        %1423 = vmatpush2.msra.mxu0 0.0
        %1424 = vmatprep.subr.mxu0 0.0
        %1425 = vmatpush2.msra.mxu0 0.0
        %1426 = vmatprep.subr.mxu0 0.0
        %1427 = vmatpush2.msra.mxu0 0.0
        %1428 = vmatprep.subr.mxu0 0.0
        %1429 = vmatpush2.msra.mxu0 0.0
        %1430 = vmatprep.subr.mxu0 0.0
        %1431 = vmatpush2.msra.mxu0 0.0
        %1432 = vmatprep.mubr.f32.mxu0 0.0
        %1433 = vmatmul.mubr.f32.gmra.mxu0 %v1366
        %v1434 = vpop.f32.mrf.mxu0
        %v1435 = vadd.f32 %v1364, %v1434
        %v1436 = vpop.f32.mrf.mxu0
        %1437 = vdwg.mxu0
        %v1438 = vmax.f32 %v1435, 0.0
        %v1439 = vld [vmem:[%s463] sm:$0xff]
        %v1440 = vld [vmem:[%s463 + $0x8] sm:$0xff]
        %v1441 = vld [vmem:[%s463 + $0x10] sm:$0xff]
        %v1442 = vld [vmem:[%s463 + $0x18] sm:$0xff]
        %v1443 = vld [vmem:[%s463 + $0x20] sm:$0xff]
        %v1444 = vld [vmem:[%s463 + $0x28] sm:$0xff]
        %v1445 = vld [vmem:[%s463 + $0x30] sm:$0xff]
        %v1446 = vld [vmem:[%s463 + $0x38] sm:$0xff]
        %v1447 = vlaneseq
        %v1448 = vshrl.u32 %v1447, 7
        %v1449 = vsub.s32 5, %v1448
        %v1450 = vrot.slane %v472, %v1449
        %vm1451 = vcmask 523264
        %v1453 = vsel %vm1451, %v1438, 0
        %1455 = vmatprep.subr.mxu0 0.0
        %1456 = vmatpush1.msra.mxu0 0.0
        %1457 = vmatprep.subr.mxu0 0.0
        %1458 = vmatpush1.msra.mxu0 0.0
        %1459 = vmatprep.subr.mxu0 0.0
        %1460 = vmatpush1.msra.mxu0 0.0
        %1461 = vmatprep.subr.mxu0 0.0
        %1462 = vmatpush1.msra.mxu0 0.0
        %1463 = vmatprep.subr.mxu0 0.0
        %1464 = vmatpush1.msra.mxu0 0.0
        %1465 = vmatprep.subr.mxu0 0.0
        %1466 = vmatpush1.msra.mxu0 0.0
        %1467 = vmatprep.subr.mxu0 0.0
        %1468 = vmatpush1.msra.mxu0 0.0
        %1469 = vmatprep.subr.mxu0 0.0
        %1470 = vmatpush1.msra.mxu0 0.0
        %1471 = vmatprep.subr.mxu0 0.0
        %1472 = vmatpush1.msra.mxu0 %v1446
        %1473 = vmatprep.subr.mxu0 0.0
        %1474 = vmatpush1.msra.mxu0 %v1445
        %1475 = vmatprep.subr.mxu0 0.0
        %1476 = vmatpush1.msra.mxu0 %v1444
        %1477 = vmatprep.subr.mxu0 0.0
        %1478 = vmatpush1.msra.mxu0 %v1443
        %1479 = vmatprep.subr.mxu0 0.0
        %1480 = vmatpush1.msra.mxu0 %v1442
        %1481 = vmatprep.subr.mxu0 0.0
        %1482 = vmatpush1.msra.mxu0 %v1441
        %1483 = vmatprep.subr.mxu0 0.0
        %1484 = vmatpush1.msra.mxu0 %v1440
        %1485 = vmatprep.subr.mxu0 0.0
        %1486 = vmatpush1.msra.mxu0 %v1439
        %1487 = vmatprep.subr.mxu0 0.0
        %1488 = vmatpush2.msra.mxu0 0.0
        %1489 = vmatprep.subr.mxu0 0.0
        %1490 = vmatpush2.msra.mxu0 0.0
        %1491 = vmatprep.subr.mxu0 0.0
        %1492 = vmatpush2.msra.mxu0 0.0
        %1493 = vmatprep.subr.mxu0 0.0
        %1494 = vmatpush2.msra.mxu0 0.0
        %1495 = vmatprep.subr.mxu0 0.0
        %1496 = vmatpush2.msra.mxu0 0.0
        %1497 = vmatprep.subr.mxu0 0.0
        %1498 = vmatpush2.msra.mxu0 0.0
        %1499 = vmatprep.subr.mxu0 0.0
        %1500 = vmatpush2.msra.mxu0 0.0
        %1501 = vmatprep.subr.mxu0 0.0
        %1502 = vmatpush2.msra.mxu0 0.0
        %1503 = vmatprep.subr.mxu0 0.0
        %1504 = vmatpush2.msra.mxu0 0.0
        %1505 = vmatprep.subr.mxu0 0.0
        %1506 = vmatpush2.msra.mxu0 0.0
        %1507 = vmatprep.subr.mxu0 0.0
        %1508 = vmatpush2.msra.mxu0 0.0
        %1509 = vmatprep.subr.mxu0 0.0
        %1510 = vmatpush2.msra.mxu0 0.0
        %1511 = vmatprep.subr.mxu0 0.0
        %1512 = vmatpush2.msra.mxu0 0.0
        %1513 = vmatprep.subr.mxu0 0.0
        %1514 = vmatpush2.msra.mxu0 0.0
        %1515 = vmatprep.subr.mxu0 0.0
        %1516 = vmatpush2.msra.mxu0 0.0
        %1517 = vmatprep.subr.mxu0 0.0
        %1518 = vmatpush2.msra.mxu0 0.0
        %1519 = vmatprep.mubr.f32.mxu0 0.0
        %1520 = vmatmul.mubr.f32.gmra.mxu0 %v1453
        %v1521 = vpop.f32.mrf.mxu0
        %v1522 = vadd.f32 %v1450, %v1521
        %v1523 = vpop.f32.mrf.mxu0
        %1524 = vdwg.mxu0
        %v1525 = vadd.f32 %v1356, %v1522
        %v1526 = vsel %vm481, %v1525, 0.0
        %1527 = vadd.xlane.f32.xlu0 %v1526
        %v1528 = vpop.xlane.xlu0 %1527
        %v1529 = vmul.f32 %v1528, %v1336
        %v1530 = vsub.f32 %v1525, %v1529
        %v1531 = vmul.f32 %v1530, %v1530
        %v1532 = vsel %vm481, %v1531, 0.0
        %1533 = vadd.xlane.f32.xlu0 %v1532
        %v1534 = vpop.xlane.xlu0 %1533
        %v1535 = vmul.f32 %v1534, %v1336
        %v1536 = vadd.f32 %v1535, 1e-05
        %v1537 = vrsqrt.pop %v1536
        %v1538 = vmul.f32 %v1530, %v1537
        %v1539 = vlaneseq
        %v1540 = vshrl.u32 %v1539, 7
        %v1541 = vsub.s32 6, %v1540
        %v1542 = vrot.slane %v472, %v1541
        %v1543 = vmul.f32 %v1538, %v1542
        %v1544 = vlaneseq
        %v1545 = vshrl.u32 %v1544, 7
        %v1546 = vsub.s32 7, %v1545
        %v1547 = vrot.slane %v472, %v1546
        %v1548 = vadd.f32 %v1543, %v1547
        %1549 = vst.msk [vmem:[#allocation2] sm:$0xff] %vm481, %v1548
        %p1550 = scmp.eq.s32.totalorder %s33, 1
        // Predicated region
        $region69: #{tpu_custom_call.1} parent=51 // pred_check
          %p1551 = pneg %p1550
        $region70: #{tpu_custom_call.1} parent=51 // pred_check_branch
          %1553 = sbr.rel (%p1551) target = $region72
        $region71: #{tpu_custom_call.1} parent=51 // pred_region
          %v1554 = vld [vmem:[#allocation9] sm:$0xff]
          %v1555 = vld [vmem:[#allocation9 + $0x8] sm:$0xff]
          %v1556 = vld [vmem:[#allocation9 + $0x10] sm:$0xff]
          %v1557 = vld [vmem:[#allocation9 + $0x18] sm:$0xff]
          %v1558 = vld [vmem:[%s7] sm:$0x1]
          %v1560 = vlaneseq
          %v1561 = vshrl.u32 %v1560, 7
          %v1562 = vsub.s32 0, %v1561
          %v1563 = vrot.slane %v1558, %v1562
          %v1566 = vsel %vm481, %v1548, 0
          %1568 = vmatprep.subr.mxu0 0.0
          %1569 = vmatpush1.msra.mxu0 0.0
          %1570 = vmatprep.subr.mxu0 0.0
          %1571 = vmatpush1.msra.mxu0 0.0
          %1572 = vmatprep.subr.mxu0 0.0
          %1573 = vmatpush1.msra.mxu0 0.0
          %1574 = vmatprep.subr.mxu0 0.0
          %1575 = vmatpush1.msra.mxu0 0.0
          %1576 = vmatprep.subr.mxu0 0.0
          %1577 = vmatpush1.msra.mxu0 0.0
          %1578 = vmatprep.subr.mxu0 0.0
          %1579 = vmatpush1.msra.mxu0 0.0
          %1580 = vmatprep.subr.mxu0 0.0
          %1581 = vmatpush1.msra.mxu0 0.0
          %1582 = vmatprep.subr.mxu0 0.0
          %1583 = vmatpush1.msra.mxu0 0.0
          %1584 = vmatprep.subr.mxu0 0.0
          %1585 = vmatpush1.msra.mxu0 0.0
          %1586 = vmatprep.subr.mxu0 0.0
          %1587 = vmatpush1.msra.mxu0 0.0
          %1588 = vmatprep.subr.mxu0 0.0
          %1589 = vmatpush1.msra.mxu0 0.0
          %1590 = vmatprep.subr.mxu0 0.0
          %1591 = vmatpush1.msra.mxu0 0.0
          %1592 = vmatprep.subr.mxu0 0.0
          %1593 = vmatpush1.msra.mxu0 %v1557
          %1594 = vmatprep.subr.mxu0 0.0
          %1595 = vmatpush1.msra.mxu0 %v1556
          %1596 = vmatprep.subr.mxu0 0.0
          %1597 = vmatpush1.msra.mxu0 %v1555
          %1598 = vmatprep.subr.mxu0 0.0
          %1599 = vmatpush1.msra.mxu0 %v1554
          %1600 = vmatprep.subr.mxu0 0.0
          %1601 = vmatpush2.msra.mxu0 0.0
          %1602 = vmatprep.subr.mxu0 0.0
          %1603 = vmatpush2.msra.mxu0 0.0
          %1604 = vmatprep.subr.mxu0 0.0
          %1605 = vmatpush2.msra.mxu0 0.0
          %1606 = vmatprep.subr.mxu0 0.0
          %1607 = vmatpush2.msra.mxu0 0.0
          %1608 = vmatprep.subr.mxu0 0.0
          %1609 = vmatpush2.msra.mxu0 0.0
          %1610 = vmatprep.subr.mxu0 0.0
          %1611 = vmatpush2.msra.mxu0 0.0
          %1612 = vmatprep.subr.mxu0 0.0
          %1613 = vmatpush2.msra.mxu0 0.0
          %1614 = vmatprep.subr.mxu0 0.0
          %1615 = vmatpush2.msra.mxu0 0.0
          %1616 = vmatprep.subr.mxu0 0.0
          %1617 = vmatpush2.msra.mxu0 0.0
          %1618 = vmatprep.subr.mxu0 0.0
          %1619 = vmatpush2.msra.mxu0 0.0
          %1620 = vmatprep.subr.mxu0 0.0
          %1621 = vmatpush2.msra.mxu0 0.0
          %1622 = vmatprep.subr.mxu0 0.0
          %1623 = vmatpush2.msra.mxu0 0.0
          %1624 = vmatprep.subr.mxu0 0.0
          %1625 = vmatpush2.msra.mxu0 0.0
          %1626 = vmatprep.subr.mxu0 0.0
          %1627 = vmatpush2.msra.mxu0 0.0
          %1628 = vmatprep.subr.mxu0 0.0
          %1629 = vmatpush2.msra.mxu0 0.0
          %1630 = vmatprep.subr.mxu0 0.0
          %1631 = vmatpush2.msra.mxu0 0.0
          %1632 = vmatprep.mubr.f32.mxu0 0.0
          %1633 = vmatmul.mubr.f32.gmra.mxu0 %v1566
          %v1634 = vpop.f32.mrf.mxu0
          %v1635 = vadd.f32 %v1563, %v1634
          %v1636 = vpop.f32.mrf.mxu0
          %1637 = vdwg.mxu0
          %1638 = vst [vmem:[%s443] sm:$0xff] %v1635
        $region72: #{tpu_custom_call.1} parent=51 // pred_fallthru
          _
        %s1639 = sand.u32 %s246, 1
        %s1640 = scalar_lea.sflag [#allocation6], %s1639
        %s1641 = sand.u32 %s246, 1
        %s1642 = smul.addr %s1641, 8
        %s1643 = scalar_lea.vmem [#allocation10], %s1642
        // Predicated region
        $region73: #{tpu_custom_call.1} parent=51 // pred_check
          %p1644 = pneg %p256
        $region74: #{tpu_custom_call.1} parent=51 // pred_check_branch
          %1646 = sbr.rel (%p1644) target = $region76
        $region75: #{tpu_custom_call.1} parent=51 // pred_region
          %s1648 = ssub.s32 128, 128
          %1649 = vsyncadd %s1640, %s1648
          %s1650 = smul.addr %s32, 128
          %s1651 = scalar_lea.hbm %s8, %s1650
          %s1653 = sshll.u32 %s1643, 4
          %s1654 = int_to_ptr.vmem [resolvable:$true] %s1653
          %1656 = dma.vmem_to_hbm [thread:$0]  %s1654, 128, %s1651, %s1640
        $region76: #{tpu_custom_call.1} parent=51 // pred_fallthru
          _
      $region52: #{tpu_custom_call.1} parent=5 // pred_fallthru
        _
      %p1657 = scmp.le.s32.totalorder 2, %s23
      // Predicated region
      $region77: #{tpu_custom_call.1} parent=5 // pred_check
        %p1658 = pneg %p1657
      $region78: #{tpu_custom_call.1} parent=5 // pred_check_branch
        %1660 = sbr.rel (%p1658) target = $region80
      $region79: #{tpu_custom_call.1} parent=5 // pred_region
        %s1661 = ssub.s32 %s23, 2
        // Predicated region
        $region81: #{tpu_custom_call.1} parent=79 // pred_check
          %p1662 = pneg %p262
        $region82: #{tpu_custom_call.1} parent=79 // pred_check_branch
          %1664 = sbr.rel (%p1662) target = $region84
        $region83: #{tpu_custom_call.1} parent=79 // pred_region
          %s1665 = sand.u32 %s247, 1
          %s1666 = scalar_lea.sflag [#allocation6], %s1665
          %s1667 = sand.u32 %s247, 1
          %s1668 = smul.addr %s1667, 8
          %s1669 = scalar_lea.vmem [#allocation10], %s1668
          %1670 = dma.done %s1666, 128
        $region84: #{tpu_custom_call.1} parent=79 // pred_fallthru
          _
      $region80: #{tpu_custom_call.1} parent=5 // pred_fallthru
        _
    $region6: #{tpu_custom_call.1} parent=1 // loop_footer
      %s27 = sadd.s32 1, %s23
    $region7: #{tpu_custom_call.1} parent=1 // loop_footer_branch
      %22 = sbr.rel target = $region3
    $region8: #{tpu_custom_call.1} parent=1 // loop_exit
      _
    %1671 = vsyncpa [#allocation5], 1
    %s1672 = scalar_lea.sflag [#allocation5], 1
    %1673 = vsyncpa %s1672, 1
    %1674 = vsyncpa [#allocation8], 1
    %s1675 = scalar_lea.sflag [#allocation8], 1
    %1676 = vsyncpa %s1675, 1
    %1677 = vsyncpa [#allocation6], 1
    %s1678 = scalar_lea.sflag [#allocation6], 1
    %1679 = vsyncpa %s1678, 1

</llo_original>
